<compile_context>
chip_gen: v7x
topology: tpu7x:2x2x1
jax: 0.10.0
libtpu: 0.0.40
codegen_flags: <defaults>
</compile_context>

<pallas_src>
import functools

import numpy as np

import jax
import jax.numpy as jnp
from jax import lax
from jax.experimental import pallas as pl
from jax.experimental.pallas import tpu as pltpu


def bilinear_upsample_matrix(n_in: int, n_out: int) -> np.ndarray:
    """1-D bilinear interpolation matrix, align_corners=True: out = M @ in."""
    m = np.zeros((n_out, n_in), np.float32)
    if n_in == 1:                       # degenerate align_corners case
        m[:, 0] = 1.0
        return m
    src = np.arange(n_out, dtype=np.float64) * (n_in - 1) / (n_out - 1)
    i0 = np.clip(np.floor(src), 0, n_in - 1).astype(np.int64)
    i1 = np.minimum(i0 + 1, n_in - 1)
    frac = src - i0
    rows = np.arange(n_out)
    np.add.at(m, (rows, i0), 1.0 - frac)
    np.add.at(m, (rows, i1), frac)
    return m


def upblock_kernel(x_ref, mT_ref, w_ref, o_ref, patch_ref, *, W2):
    """One batch tile per grid step, fully flat-spatial (lane-dense).

    x_ref:     (bb, Cin, H*W)        input tile, flattened spatial
    mT_ref:    (H*W, H2*W2)          flat bilinear upsample operator, transposed
    w_ref:     (Cout, Kp)            folded conv weights: cols [0,9Cin)=scale*w,
                                     col 9Cin = folded shift, rest zero padding
    o_ref:     (bb, Cout, H2*W2)     output tile, flattened spatial
    patch_ref: VMEM (bb, Kp, H2*W2)  im2col patch scratch (row Kp-pad = ones/zeros)
    """
    bb, Cin, HW = x_ref.shape
    _, Cout, HW2 = o_ref.shape
    Kp = patch_ref.shape[1]
    nb = 9 * Cin
    R = bb * Cin

    # ---- 1) bilinear upsample for all images/channels: one wide MXU matmul ----
    xf = x_ref[...].reshape(R, HW)                       # leading-dim merge only
    up = jnp.dot(xf, mT_ref[...],
                 preferred_element_type=jnp.float32)     # (R, H2*W2), flat layout

    # ---- 2) im2col in the flat layout: lane rolls (XLU) + boundary masks ----
    lane = lax.broadcasted_iota(jnp.int32, (R, HW2), 1)
    q = lane % W2                                        # output column index
    x_shift = {
        -1: jnp.where(q == 0, 0.0, pltpu.roll(up, shift=1, axis=1)),
        0: up,
        1: jnp.where(q == W2 - 1, 0.0, pltpu.roll(up, shift=HW2 - 1, axis=1)),
    }
    t = 0
    for dy in (-1, 0, 1):
        for dx in (-1, 0, 1):
            x_part = x_shift[dx]
            if dy == -1:
                s = jnp.where(lane < W2, 0.0,
                              pltpu.roll(x_part, shift=W2, axis=1))
            elif dy == 1:
                s = jnp.where(lane >= HW2 - W2, 0.0,
                              pltpu.roll(x_part, shift=HW2 - W2, axis=1))
            else:
                s = x_part
            for i in range(bb):
                patch_ref[i, t * Cin:(t + 1) * Cin, :] = s[i * Cin:(i + 1) * Cin, :]
            t += 1

    # ones row carries the folded (conv bias + BN) shift; zero rows pad K to Kp
    for i in range(bb):
        patch_ref[i, nb:nb + 1, :] = jnp.ones((1, HW2), jnp.float32)
        if Kp > nb + 1:
            patch_ref[i, nb + 1:Kp, :] = jnp.zeros((Kp - nb - 1, HW2), jnp.float32)

    # ---- 3) conv + BN affine as one MXU matmul per image, ReLU, dense store ----
    # Dropout(0.1) in eval mode == identity.
    w = w_ref[...]
    for i in range(bb):
        y = jnp.dot(w, patch_ref[i],
                    preferred_element_type=jnp.float32)  # (Cout, H2*W2)
        o_ref[i] = jnp.maximum(y, 0.0).astype(o_ref.dtype)


def upblock_forward(x_nchw, params, *, batch_tile=1):
    """UpBlock forward. x_nchw: (N, Cin, H, W) float32 -> (N, Cout, 2H, 2W)."""
    N, Cin, H, W = x_nchw.shape
    H2, W2 = 2 * H, 2 * W
    HW, HW2 = H * W, H2 * W2
    Cout = params["conv_w"].shape[0]
    assert N % batch_tile == 0, (N, batch_tile)

    # ---- host-side constants / parameter folding (tiny, plain numpy/JAX) ----
    Uh = bilinear_upsample_matrix(H, H2)                       # (H2, H)
    Uw = bilinear_upsample_matrix(W, W2)                       # (W2, W)
    M_T = jnp.asarray(np.kron(Uh, Uw).T)                       # (H*W, H2*W2)

    eps = 1e-5
    scale = params["bn_gamma"] / jnp.sqrt(params["bn_var"] + eps)            # (Cout,)
    shift = (params["conv_b"] - params["bn_mean"]) * scale + params["bn_beta"]

    # conv taps ordered (ky, kx, ci) to match patch row order; BN scale folded in.
    w_perm = jnp.transpose(params["conv_w"].astype(jnp.float32),
                           (0, 2, 3, 1)).reshape(Cout, 9 * Cin)
    K = 9 * Cin + 1
    Kp = ((K + 7) // 8) * 8                                     # pad contraction dim
    w_mat = jnp.concatenate(
        [w_perm * scale[:, None].astype(jnp.float32),
         shift[:, None].astype(jnp.float32),
         jnp.zeros((Cout, Kp - K), jnp.float32)], axis=1)       # (Cout, Kp)

    # Free metadata reshape of contiguous NCHW -> flat spatial lanes.
    x_flat = x_nchw.astype(jnp.float32).reshape(N, Cin, HW)

    kernel = functools.partial(upblock_kernel, W2=W2)

    grid_spec = pltpu.PrefetchScalarGridSpec(
        num_scalar_prefetch=0,
        grid=(N // batch_tile,),
        in_specs=[
            pl.BlockSpec((batch_tile, Cin, HW), lambda n: (n, 0, 0)),
            pl.BlockSpec((HW, HW2), lambda n: (0, 0)),        # upsample operator
            pl.BlockSpec((Cout, Kp), lambda n: (0, 0)),       # folded conv weights
        ],
        out_specs=pl.BlockSpec((batch_tile, Cout, HW2), lambda n: (n, 0, 0)),
        scratch_shapes=[pltpu.VMEM((batch_tile, Kp, HW2), jnp.float32)],
    )

    out = pl.pallas_call(
        kernel,
        out_shape=jax.ShapeDtypeStruct((N, Cout, HW2), jnp.float32),
        grid_spec=grid_spec,
        compiler_params=pltpu.CompilerParams(
            dimension_semantics=("parallel",),
            vmem_limit_bytes=32 * 1024 * 1024,
        ),
    )(x_flat, M_T, w_mat)

    return out.reshape(N, Cout, H2, W2)                        # free metadata reshape


def reference_forward(x_nchw, params):
    """Pure-JAX reference with identical math (for verification of the kernel)."""
    N, Cin, H, W = x_nchw.shape
    H2, W2 = 2 * H, 2 * W
    x = x_nchw.astype(jnp.float32)

    Uh = jnp.asarray(bilinear_upsample_matrix(H, H2))
    Uw = jnp.asarray(bilinear_upsample_matrix(W, W2))
    up = jnp.einsum("ph,qw,nchw->ncpq", Uh, Uw, x,
                    precision=lax.Precision.HIGHEST)

    conv = lax.conv_general_dilated(
        up, params["conv_w"].astype(jnp.float32),
        window_strides=(1, 1), padding=((1, 1), (1, 1)),
        dimension_numbers=("NCHW", "OIHW", "NCHW"),
        precision=lax.Precision.HIGHEST)

    eps = 1e-5
    scale = params["bn_gamma"] / jnp.sqrt(params["bn_var"] + eps)
    shift = (params["conv_b"] - params["bn_mean"]) * scale + params["bn_beta"]
    y = conv * scale.reshape(1, -1, 1, 1) + shift.reshape(1, -1, 1, 1)
    return jnp.maximum(y, 0.0)


def init_params(key, ch_in, ch_out):
    k = jax.random.split(key, 6)
    return {
        "conv_w": 0.1 * jax.random.normal(k[0], (ch_out, ch_in, 3, 3), jnp.float32),
        "conv_b": 0.1 * jax.random.normal(k[1], (ch_out,), jnp.float32),
        "bn_gamma": 1.0 + 0.1 * jax.random.normal(k[2], (ch_out,), jnp.float32),
        "bn_beta": 0.1 * jax.random.normal(k[3], (ch_out,), jnp.float32),
        "bn_mean": 0.1 * jax.random.normal(k[4], (ch_out,), jnp.float32),
        "bn_var": jax.random.uniform(k[5], (ch_out,), jnp.float32, 0.5, 1.5),
    }


if __name__ == "__main__":
    key = jax.random.PRNGKey(0)
    k_x, k_p = jax.random.split(key)

    N, CH_IN, CH_OUT, H, W = 2, 4, 8, 16, 16
    x = jax.random.normal(k_x, (N, CH_IN, H, W), jnp.float32)   # NCHW like PyTorch
    params = init_params(k_p, CH_IN, CH_OUT)

    ref = jax.block_until_ready(reference_forward(x, params))

    # batch_tile=1: batch axis stays "parallel" (v7x megacore friendly).
    out1 = jax.block_until_ready(upblock_forward(x, params, batch_tile=1))
    assert out1.shape == (N, CH_OUT, 2 * H, 2 * W), out1.shape
    err1 = float(jnp.max(jnp.abs(out1 - ref)))
    assert err1 < 1e-3, f"mismatch vs reference (batch_tile=1): {err1}"

    # batch_tile=N: one fat grid step (amortizes per-step overhead on v5e/v6e).
    out2 = jax.block_until_ready(upblock_forward(x, params, batch_tile=N))
    err2 = float(jnp.max(jnp.abs(out2 - ref)))
    assert err2 < 1e-3, f"mismatch vs reference (batch_tile=N): {err2}"

    print("KERNEL_OK")
</pallas_src>

<mosaic_0001>
module attributes {stable_mosaic.version = 11 : i64} {
  func.func @upblock_kernel(%arg0: i32, %arg1: memref<1x4x256xf32, #tpu.memory_space<vmem>>, %arg2: memref<256x1024xf32, #tpu.memory_space<vmem>>, %arg3: memref<8x40xf32, #tpu.memory_space<vmem>>, %arg4: memref<1x8x1024xf32, #tpu.memory_space<vmem>>, %arg5: memref<1x40x1024xf32, #tpu.memory_space<vmem>>) attributes {dimension_semantics = [#tpu.dimension_semantics<parallel>], iteration_bounds = array<i64: 2>, scalar_prefetch = 0 : i64, scratch_operands = 1 : i64, tpu.core_type = #tpu.core_type<tc>, window_params = [{transform_indices = @transform_0, window_bounds = array<i64: 1, 4, 256>}, {pipeline_mode = #tpu.pipeline_mode<synchronous>, transform_indices = @transform_1, window_bounds = array<i64: 256, 1024>}, {pipeline_mode = #tpu.pipeline_mode<synchronous>, transform_indices = @transform_2, window_bounds = array<i64: 8, 40>}, {transform_indices = @transform_3, window_bounds = array<i64: 1, 8, 1024>}]} {
    %c0 = arith.constant 0 : index
    %c0_0 = arith.constant 0 : index
    %c0_1 = arith.constant 0 : index
    %0 = vector.load %arg1[%c0, %c0_0, %c0_1] : memref<1x4x256xf32, #tpu.memory_space<vmem>>, vector<1x4x256xf32>
    %1 = vector.shape_cast %0 : vector<1x4x256xf32> to vector<4x256xf32>
    %c0_2 = arith.constant 0 : index
    %c0_3 = arith.constant 0 : index
    %2 = vector.load %arg2[%c0_2, %c0_3] : memref<256x1024xf32, #tpu.memory_space<vmem>>, vector<256x1024xf32>
    %cst = arith.constant dense<0.000000e+00> : vector<4x1024xf32>
    %3 = tpu.matmul %1, %2, %cst {dimension_numbers = #tpu.dot_dimension_numbers<[1], [0], [0], [1], [0, 0, 1, 1], [], []>} : vector<4x256xf32>, vector<256x1024xf32>, vector<4x1024xf32> -> vector<4x1024xf32>
    %4 = tpu.iota {dimensions = array<i32: 1>} : vector<4x1024xi32>
    %c32_i32 = arith.constant 32 : i32
    %c0_i32 = arith.constant 0 : i32
    %5 = arith.cmpi eq, %c32_i32, %c0_i32 : i32
    %c1_i32 = arith.constant 1 : i32
    %6 = arith.select %5, %c1_i32, %c32_i32 : i32
    %7 = vector.broadcast %6 : i32 to vector<4x1024xi32>
    %8 = arith.remsi %4, %7 : vector<4x1024xi32>
    %c0_i32_4 = arith.constant 0 : i32
    %9 = vector.broadcast %c0_i32_4 : i32 to vector<4x1024xi32>
    %10 = arith.cmpi ne, %8, %9 : vector<4x1024xi32>
    %c0_i32_5 = arith.constant 0 : i32
    %11 = vector.broadcast %c0_i32_5 : i32 to vector<4x1024xi32>
    %12 = arith.cmpi slt, %8, %11 : vector<4x1024xi32>
    %c0_i32_6 = arith.constant 0 : i32
    %13 = arith.cmpi slt, %6, %c0_i32_6 : i32
    %14 = vector.broadcast %13 : i1 to vector<4x1024xi1>
    %15 = vector.broadcast %14 : vector<4x1024xi1> to vector<4x1024xi1>
    %16 = arith.xori %12, %15 : vector<4x1024xi1>
    %17 = arith.andi %16, %10 : vector<4x1024xi1>
    %18 = vector.broadcast %6 : i32 to vector<4x1024xi32>
    %19 = arith.addi %8, %18 : vector<4x1024xi32>
    %20 = arith.select %17, %19, %8 : vector<4x1024xi1>, vector<4x1024xi32>
    %c0_i32_7 = arith.constant 0 : i32
    %21 = vector.broadcast %c0_i32_7 : i32 to vector<4x1024xi32>
    %22 = arith.cmpi eq, %20, %21 : vector<4x1024xi32>
    %c1_i32_8 = arith.constant 1 : i32
    %23 = tpu.dynamic_rotate %3 by %c1_i32_8 dim 1 : vector<4x1024xf32>, i32 -> vector<4x1024xf32>
    %cst_9 = arith.constant 0.000000e+00 : f32
    %24 = vector.broadcast %cst_9 : f32 to vector<4x1024xf32>
    %25 = arith.select %22, %24, %23 : vector<4x1024xi1>, vector<4x1024xf32>
    %c31_i32 = arith.constant 31 : i32
    %26 = vector.broadcast %c31_i32 : i32 to vector<4x1024xi32>
    %27 = arith.cmpi eq, %20, %26 : vector<4x1024xi32>
    %c1023_i32 = arith.constant 1023 : i32
    %28 = tpu.dynamic_rotate %3 by %c1023_i32 dim 1 : vector<4x1024xf32>, i32 -> vector<4x1024xf32>
    %cst_10 = arith.constant 0.000000e+00 : f32
    %29 = vector.broadcast %cst_10 : f32 to vector<4x1024xf32>
    %30 = arith.select %27, %29, %28 : vector<4x1024xi1>, vector<4x1024xf32>
    %c32_i32_11 = arith.constant 32 : i32
    %31 = vector.broadcast %c32_i32_11 : i32 to vector<4x1024xi32>
    %32 = arith.cmpi slt, %4, %31 : vector<4x1024xi32>
    %c32_i32_12 = arith.constant 32 : i32
    %33 = tpu.dynamic_rotate %25 by %c32_i32_12 dim 1 : vector<4x1024xf32>, i32 -> vector<4x1024xf32>
    %cst_13 = arith.constant 0.000000e+00 : f32
    %34 = vector.broadcast %cst_13 : f32 to vector<4x1024xf32>
    %35 = arith.select %32, %34, %33 : vector<4x1024xi1>, vector<4x1024xf32>
    %c0_14 = arith.constant 0 : index
    %c0_15 = arith.constant 0 : index
    %c0_16 = arith.constant 0 : index
    %36 = vector.load %arg5[%c0_14, %c0_15, %c0_16] : memref<1x40x1024xf32, #tpu.memory_space<vmem>>, vector<1x4x1024xf32>
    %37 = vector.shape_cast %36 : vector<1x4x1024xf32> to vector<4x1024xf32>
    %38 = vector.shape_cast %35 : vector<4x1024xf32> to vector<1x4x1024xf32>
    tpu.vector_store %arg5[%c0_14, %c0_15, %c0_16], %38 {strides = array<i32>} : memref<1x40x1024xf32, #tpu.memory_space<vmem>>, vector<1x4x1024xf32>,
    %c32_i32_17 = arith.constant 32 : i32
    %39 = vector.broadcast %c32_i32_17 : i32 to vector<4x1024xi32>
    %40 = arith.cmpi slt, %4, %39 : vector<4x1024xi32>
    %c32_i32_18 = arith.constant 32 : i32
    %41 = tpu.dynamic_rotate %3 by %c32_i32_18 dim 1 : vector<4x1024xf32>, i32 -> vector<4x1024xf32>
    %cst_19 = arith.constant 0.000000e+00 : f32
    %42 = vector.broadcast %cst_19 : f32 to vector<4x1024xf32>
    %43 = arith.select %40, %42, %41 : vector<4x1024xi1>, vector<4x1024xf32>
    %c0_20 = arith.constant 0 : index
    %c4 = arith.constant 4 : index
    %c0_21 = arith.constant 0 : index
    %44 = vector.load %arg5[%c0_20, %c4, %c0_21] : memref<1x40x1024xf32, #tpu.memory_space<vmem>>, vector<1x4x1024xf32>
    %45 = vector.shape_cast %44 : vector<1x4x1024xf32> to vector<4x1024xf32>
    %46 = vector.shape_cast %43 : vector<4x1024xf32> to vector<1x4x1024xf32>
    tpu.vector_store %arg5[%c0_20, %c4, %c0_21], %46 {strides = array<i32>} : memref<1x40x1024xf32, #tpu.memory_space<vmem>>, vector<1x4x1024xf32>,
    %c32_i32_22 = arith.constant 32 : i32
    %47 = vector.broadcast %c32_i32_22 : i32 to vector<4x1024xi32>
    %48 = arith.cmpi slt, %4, %47 : vector<4x1024xi32>
    %c32_i32_23 = arith.constant 32 : i32
    %49 = tpu.dynamic_rotate %30 by %c32_i32_23 dim 1 : vector<4x1024xf32>, i32 -> vector<4x1024xf32>
    %cst_24 = arith.constant 0.000000e+00 : f32
    %50 = vector.broadcast %cst_24 : f32 to vector<4x1024xf32>
    %51 = arith.select %48, %50, %49 : vector<4x1024xi1>, vector<4x1024xf32>
    %c0_25 = arith.constant 0 : index
    %c8 = arith.constant 8 : index
    %c0_26 = arith.constant 0 : index
    %52 = vector.load %arg5[%c0_25, %c8, %c0_26] : memref<1x40x1024xf32, #tpu.memory_space<vmem>>, vector<1x4x1024xf32>
    %53 = vector.shape_cast %52 : vector<1x4x1024xf32> to vector<4x1024xf32>
    %54 = vector.shape_cast %51 : vector<4x1024xf32> to vector<1x4x1024xf32>
    tpu.vector_store %arg5[%c0_25, %c8, %c0_26], %54 {strides = array<i32>} : memref<1x40x1024xf32, #tpu.memory_space<vmem>>, vector<1x4x1024xf32>,
    %c0_27 = arith.constant 0 : index
    %c12 = arith.constant 12 : index
    %c0_28 = arith.constant 0 : index
    %55 = vector.load %arg5[%c0_27, %c12, %c0_28] : memref<1x40x1024xf32, #tpu.memory_space<vmem>>, vector<1x4x1024xf32>
    %56 = vector.shape_cast %55 : vector<1x4x1024xf32> to vector<4x1024xf32>
    %57 = vector.shape_cast %25 : vector<4x1024xf32> to vector<1x4x1024xf32>
    tpu.vector_store %arg5[%c0_27, %c12, %c0_28], %57 {strides = array<i32>} : memref<1x40x1024xf32, #tpu.memory_space<vmem>>, vector<1x4x1024xf32>,
    %c0_29 = arith.constant 0 : index
    %c16 = arith.constant 16 : index
    %c0_30 = arith.constant 0 : index
    %58 = vector.load %arg5[%c0_29, %c16, %c0_30] : memref<1x40x1024xf32, #tpu.memory_space<vmem>>, vector<1x4x1024xf32>
    %59 = vector.shape_cast %58 : vector<1x4x1024xf32> to vector<4x1024xf32>
    %60 = vector.shape_cast %3 : vector<4x1024xf32> to vector<1x4x1024xf32>
    tpu.vector_store %arg5[%c0_29, %c16, %c0_30], %60 {strides = array<i32>} : memref<1x40x1024xf32, #tpu.memory_space<vmem>>, vector<1x4x1024xf32>,
    %c0_31 = arith.constant 0 : index
    %c20 = arith.constant 20 : index
    %c0_32 = arith.constant 0 : index
    %61 = vector.load %arg5[%c0_31, %c20, %c0_32] : memref<1x40x1024xf32, #tpu.memory_space<vmem>>, vector<1x4x1024xf32>
    %62 = vector.shape_cast %61 : vector<1x4x1024xf32> to vector<4x1024xf32>
    %63 = vector.shape_cast %30 : vector<4x1024xf32> to vector<1x4x1024xf32>
    tpu.vector_store %arg5[%c0_31, %c20, %c0_32], %63 {strides = array<i32>} : memref<1x40x1024xf32, #tpu.memory_space<vmem>>, vector<1x4x1024xf32>,
    %c992_i32 = arith.constant 992 : i32
    %64 = vector.broadcast %c992_i32 : i32 to vector<4x1024xi32>
    %65 = arith.cmpi sge, %4, %64 : vector<4x1024xi32>
    %c992_i32_33 = arith.constant 992 : i32
    %66 = tpu.dynamic_rotate %25 by %c992_i32_33 dim 1 : vector<4x1024xf32>, i32 -> vector<4x1024xf32>
    %cst_34 = arith.constant 0.000000e+00 : f32
    %67 = vector.broadcast %cst_34 : f32 to vector<4x1024xf32>
    %68 = arith.select %65, %67, %66 : vector<4x1024xi1>, vector<4x1024xf32>
    %c0_35 = arith.constant 0 : index
    %c24 = arith.constant 24 : index
    %c0_36 = arith.constant 0 : index
    %69 = vector.load %arg5[%c0_35, %c24, %c0_36] : memref<1x40x1024xf32, #tpu.memory_space<vmem>>, vector<1x4x1024xf32>
    %70 = vector.shape_cast %69 : vector<1x4x1024xf32> to vector<4x1024xf32>
    %71 = vector.shape_cast %68 : vector<4x1024xf32> to vector<1x4x1024xf32>
    tpu.vector_store %arg5[%c0_35, %c24, %c0_36], %71 {strides = array<i32>} : memref<1x40x1024xf32, #tpu.memory_space<vmem>>, vector<1x4x1024xf32>,
    %c992_i32_37 = arith.constant 992 : i32
    %72 = vector.broadcast %c992_i32_37 : i32 to vector<4x1024xi32>
    %73 = arith.cmpi sge, %4, %72 : vector<4x1024xi32>
    %c992_i32_38 = arith.constant 992 : i32
    %74 = tpu.dynamic_rotate %3 by %c992_i32_38 dim 1 : vector<4x1024xf32>, i32 -> vector<4x1024xf32>
    %cst_39 = arith.constant 0.000000e+00 : f32
    %75 = vector.broadcast %cst_39 : f32 to vector<4x1024xf32>
    %76 = arith.select %73, %75, %74 : vector<4x1024xi1>, vector<4x1024xf32>
    %c0_40 = arith.constant 0 : index
    %c28 = arith.constant 28 : index
    %c0_41 = arith.constant 0 : index
    %77 = vector.load %arg5[%c0_40, %c28, %c0_41] : memref<1x40x1024xf32, #tpu.memory_space<vmem>>, vector<1x4x1024xf32>
    %78 = vector.shape_cast %77 : vector<1x4x1024xf32> to vector<4x1024xf32>
    %79 = vector.shape_cast %76 : vector<4x1024xf32> to vector<1x4x1024xf32>
    tpu.vector_store %arg5[%c0_40, %c28, %c0_41], %79 {strides = array<i32>} : memref<1x40x1024xf32, #tpu.memory_space<vmem>>, vector<1x4x1024xf32>,
    %c992_i32_42 = arith.constant 992 : i32
    %80 = vector.broadcast %c992_i32_42 : i32 to vector<4x1024xi32>
    %81 = arith.cmpi sge, %4, %80 : vector<4x1024xi32>
    %c992_i32_43 = arith.constant 992 : i32
    %82 = tpu.dynamic_rotate %30 by %c992_i32_43 dim 1 : vector<4x1024xf32>, i32 -> vector<4x1024xf32>
    %cst_44 = arith.constant 0.000000e+00 : f32
    %83 = vector.broadcast %cst_44 : f32 to vector<4x1024xf32>
    %84 = arith.select %81, %83, %82 : vector<4x1024xi1>, vector<4x1024xf32>
    %c0_45 = arith.constant 0 : index
    %c32 = arith.constant 32 : index
    %c0_46 = arith.constant 0 : index
    %85 = vector.load %arg5[%c0_45, %c32, %c0_46] : memref<1x40x1024xf32, #tpu.memory_space<vmem>>, vector<1x4x1024xf32>
    %86 = vector.shape_cast %85 : vector<1x4x1024xf32> to vector<4x1024xf32>
    %87 = vector.shape_cast %84 : vector<4x1024xf32> to vector<1x4x1024xf32>
    tpu.vector_store %arg5[%c0_45, %c32, %c0_46], %87 {strides = array<i32>} : memref<1x40x1024xf32, #tpu.memory_space<vmem>>, vector<1x4x1024xf32>,
    %cst_47 = arith.constant 1.000000e+00 : f32
    %88 = vector.broadcast %cst_47 : f32 to vector<1x1024xf32>
    %c0_48 = arith.constant 0 : index
    %c36 = arith.constant 36 : index
    %c0_49 = arith.constant 0 : index
    %89 = vector.load %arg5[%c0_48, %c36, %c0_49] : memref<1x40x1024xf32, #tpu.memory_space<vmem>>, vector<1x1x1024xf32>
    %90 = vector.shape_cast %89 : vector<1x1x1024xf32> to vector<1x1024xf32>
    %91 = vector.shape_cast %88 : vector<1x1024xf32> to vector<1x1x1024xf32>
    tpu.vector_store %arg5[%c0_48, %c36, %c0_49], %91 {strides = array<i32>} : memref<1x40x1024xf32, #tpu.memory_space<vmem>>, vector<1x1x1024xf32>,
    %cst_50 = arith.constant 0.000000e+00 : f32
    %92 = vector.broadcast %cst_50 : f32 to vector<3x1024xf32>
    %c0_51 = arith.constant 0 : index
    %c37 = arith.constant 37 : index
    %c0_52 = arith.constant 0 : index
    %93 = vector.load %arg5[%c0_51, %c37, %c0_52] : memref<1x40x1024xf32, #tpu.memory_space<vmem>>, vector<1x3x1024xf32>
    %94 = vector.shape_cast %93 : vector<1x3x1024xf32> to vector<3x1024xf32>
    %95 = vector.shape_cast %92 : vector<3x1024xf32> to vector<1x3x1024xf32>
    tpu.vector_store %arg5[%c0_51, %c37, %c0_52], %95 {strides = array<i32>} : memref<1x40x1024xf32, #tpu.memory_space<vmem>>, vector<1x3x1024xf32>,
    %c0_53 = arith.constant 0 : index
    %c0_54 = arith.constant 0 : index
    %96 = vector.load %arg3[%c0_53, %c0_54] : memref<8x40xf32, #tpu.memory_space<vmem>>, vector<8x40xf32>
    %c0_55 = arith.constant 0 : index
    %c0_56 = arith.constant 0 : index
    %c0_57 = arith.constant 0 : index
    %97 = vector.load %arg5[%c0_55, %c0_56, %c0_57] : memref<1x40x1024xf32, #tpu.memory_space<vmem>>, vector<1x40x1024xf32>
    %98 = vector.shape_cast %97 : vector<1x40x1024xf32> to vector<40x1024xf32>
    %cst_58 = arith.constant dense<0.000000e+00> : vector<8x1024xf32>
    %99 = tpu.matmul %96, %98, %cst_58 {dimension_numbers = #tpu.dot_dimension_numbers<[1], [0], [0], [1], [0, 0, 1, 1], [], []>} : vector<8x40xf32>, vector<40x1024xf32>, vector<8x1024xf32> -> vector<8x1024xf32>
    %cst_59 = arith.constant 0.000000e+00 : f32
    %100 = vector.broadcast %cst_59 : f32 to vector<8x1024xf32>
    %101 = arith.maximumf %99, %100 : vector<8x1024xf32>
    %c0_60 = arith.constant 0 : index
    %c0_61 = arith.constant 0 : index
    %c0_62 = arith.constant 0 : index
    %102 = vector.load %arg4[%c0_60, %c0_61, %c0_62] : memref<1x8x1024xf32, #tpu.memory_space<vmem>>, vector<1x8x1024xf32>
    %103 = vector.shape_cast %102 : vector<1x8x1024xf32> to vector<8x1024xf32>
    %104 = vector.shape_cast %101 : vector<8x1024xf32> to vector<1x8x1024xf32>
    tpu.vector_store %arg4[%c0_60, %c0_61, %c0_62], %104 {strides = array<i32>} : memref<1x8x1024xf32, #tpu.memory_space<vmem>>, vector<1x8x1024xf32>,
    return
  }
  func.func @transform_0(%arg0: i32) -> (i32, i32, i32) {
    %c0_i32 = arith.constant 0 : i32
    %c0_i32_0 = arith.constant 0 : i32
    %c0_i32_1 = arith.constant 0 : i32
    return %arg0, %c0_i32, %c0_i32_0 : i32, i32, i32
  }
  func.func @transform_1(%arg0: i32) -> (i32, i32) {
    %c0_i32 = arith.constant 0 : i32
    %c0_i32_0 = arith.constant 0 : i32
    %c0_i32_1 = arith.constant 0 : i32
    return %c0_i32, %c0_i32_0 : i32, i32
  }
  func.func @transform_2(%arg0: i32) -> (i32, i32) {
    %c0_i32 = arith.constant 0 : i32
    %c0_i32_0 = arith.constant 0 : i32
    %c0_i32_1 = arith.constant 0 : i32
    return %c0_i32, %c0_i32_0 : i32, i32
  }
  func.func @transform_3(%arg0: i32) -> (i32, i32, i32) {
    %c0_i32 = arith.constant 0 : i32
    %c0_i32_0 = arith.constant 0 : i32
    %c0_i32_1 = arith.constant 0 : i32
    return %arg0, %c0_i32, %c0_i32_0 : i32, i32, i32
  }
}

</mosaic_0001>

<llo_original>
// kernel: tpu_custom_call.1
$region0: #{tpu_custom_call.1}
  #allocation0 [shape = 'u32[]', space=smem, size = 0x4, offset = 0x4, fixed_abs, tag = 'smem constant byte address 0x4 - core index']
  #allocation1 [shape = 'u32[144,128]{1,0:T(1,128)}', space=vmem, size = 0x12000, scoped, tag = 'internal scratch']
  #allocation2 [shape = 'f32[1,40,1024]{2,1,0:T(8,128)}', space=vmem, size = 0x28000, scoped, tag = 'scratch operand']
  %s0 = inlined_call_operand.hbm [shape: f32[2,4,256], index: 0, kind: input, shape index: {}]
  %s1 = inlined_call_operand.hbm [shape: f32[256,1024], index: 1, kind: input, shape index: {}]
  %s2 = inlined_call_operand.hbm [shape: f32[8,40], index: 2, kind: input, shape index: {}]
  %s3 = inlined_call_operand.hbm [shape: f32[2,8,1024], index: 3, kind: output, shape index: {}]
  %s4 = sld [smem:[#allocation0]]
  $region57: #{tpu_custom_call.1} parent=0
    _
  %s6 = ssub.s32 1, %s4
  %s7 = scalar_select 0, %s6, %s4
  $region1: #{tpu_custom_call.1} parent=0
    #allocation3 [shape = 'u8[8192]{0}', space=vmem, size = 0x2000, scoped, tag = 'input window, operand 0']
    #allocation4 [shape = 's32[2]{0}', space=sflag, size = 0x8, scoped, tag = 'scoped memory for tpu_custom_call.1']
    #allocation5 [shape = 's32[2]{0}', space=sflag, size = 0x8, scoped, tag = 'scoped memory for tpu_custom_call.1']
    #allocation6 [shape = 'u8[1048576]{0}', space=vmem, size = 0x100000, scoped, tag = 'input window, operand 1, single buffered']
    #allocation7 [shape = 's32[1]{0}', space=sflag, size = 0x4, scoped, tag = 'scoped memory for tpu_custom_call.1']
    #allocation8 [shape = 'u8[4096]{0}', space=vmem, size = 0x1000, scoped, tag = 'input window, operand 2, single buffered']
    #allocation9 [shape = 'u8[65536]{0}', space=vmem, size = 0x10000, scoped, tag = 'output window, operand 0']
    %8 = vsyncpa [#allocation4], 0
    %s9 = scalar_lea.sflag [#allocation4], 1
    %10 = vsyncpa %s9, 0
    %11 = vsyncpa [#allocation7], 0
    %12 = vsyncpa [#allocation5], 0
    %s13 = scalar_lea.sflag [#allocation5], 1
    %14 = vsyncpa %s13, 0
    loop: start=0, step=1, limit=4
    $region2: #{tpu_custom_call.1} parent=1 // loop_pre_header
      _
    $region3: #{tpu_custom_call.1} parent=1 // loop_header
      %s16 = sphi 0, %s20
      %p17 = scmp.ge.s32.totalorder %s16, 4
      %s26 = sphi 0, %s28
      %s29 = sphi 0, %s26
      %s30 = sphi 0, %s29
      %s46 = sphi 0, %s30
      %s50 = sphi 0, %s50
      %s52 = sphi 0, %s50
      %s53 = sphi 0, %s52
      %s67 = sphi 0, %s53
      %s71 = sphi 0, %s71
      %s73 = sphi 0, %s71
      %s74 = sphi 0, %s73
      %s88 = sphi 0, %s74
      %s94 = sphi 0, %s96
      %s97 = sphi 0, %s94
      %s98 = sphi 0, %s97
      %s114 = sphi 0, %s98
    $region4: #{tpu_custom_call.1} parent=1 // loop_header_branch
      %19 = sbr.rel (%p17) target = $region8
    $region5: #{tpu_custom_call.1} parent=1 // loop_body
      %s21 = ssub.s32 %s16, 1
      %s22 = ssub.s32 %s16, 2
      %s23 = sadd.s32 %s16, 1
      %s24 = ssub.s32 %s16, %s23
      %p25 = scmp.eq.s32.totalorder %s24, 0
      %s27 = sadd.s32 %s26, 1
      %s28 = scalar_select %p25, %s26, %s27
      %p31 = pneg %p25
      %p32 = scmp.eq.s32.totalorder %s16, 1
      %p33 = por %p31, %p32
      %p34 = scmp.ne.s32.totalorder %s26, %s29
      %p35 = scmp.eq.s32.totalorder %s16, 0
      %p36 = por %p34, %p35
      %p37 = scmp.ne.s32.totalorder %s26, %s29
      %p38 = scmp.eq.s32.totalorder %s21, 1
      %p39 = por %p37, %p38
      %p40 = scmp.ne.s32.totalorder %s29, %s30
      %p41 = scmp.eq.s32.totalorder %s21, 0
      %p42 = por %p40, %p41
      %p43 = scmp.ne.s32.totalorder %s29, %s30
      %p44 = scmp.eq.s32.totalorder %s22, 1
      %p45 = por %p43, %p44
      %p47 = scmp.ne.s32.totalorder %s30, %s46
      %p48 = scmp.eq.s32.totalorder %s22, 0
      %p49 = por %p47, %p48
      %s51 = sadd.s32 %s50, 1
      %p54 = scmp.eq.s32.totalorder %s16, 1
      %p55 = scmp.ne.s32.totalorder %s50, %s52
      %p56 = scmp.eq.s32.totalorder %s16, 0
      %p57 = por %p55, %p56
      %p58 = scmp.ne.s32.totalorder %s50, %s52
      %p59 = scmp.eq.s32.totalorder %s21, 1
      %p60 = por %p58, %p59
      %p61 = scmp.ne.s32.totalorder %s52, %s53
      %p62 = scmp.eq.s32.totalorder %s21, 0
      %p63 = por %p61, %p62
      %p64 = scmp.ne.s32.totalorder %s52, %s53
      %p65 = scmp.eq.s32.totalorder %s22, 1
      %p66 = por %p64, %p65
      %p68 = scmp.ne.s32.totalorder %s53, %s67
      %p69 = scmp.eq.s32.totalorder %s22, 0
      %p70 = por %p68, %p69
      %s72 = sadd.s32 %s71, 1
      %p75 = scmp.eq.s32.totalorder %s16, 1
      %p76 = scmp.ne.s32.totalorder %s71, %s73
      %p77 = scmp.eq.s32.totalorder %s16, 0
      %p78 = por %p76, %p77
      %p79 = scmp.ne.s32.totalorder %s71, %s73
      %p80 = scmp.eq.s32.totalorder %s21, 1
      %p81 = por %p79, %p80
      %p82 = scmp.ne.s32.totalorder %s73, %s74
      %p83 = scmp.eq.s32.totalorder %s21, 0
      %p84 = por %p82, %p83
      %p85 = scmp.ne.s32.totalorder %s73, %s74
      %p86 = scmp.eq.s32.totalorder %s22, 1
      %p87 = por %p85, %p86
      %p89 = scmp.ne.s32.totalorder %s74, %s88
      %p90 = scmp.eq.s32.totalorder %s22, 0
      %p91 = por %p89, %p90
      %s92 = ssub.s32 %s16, %s23
      %p93 = scmp.eq.s32.totalorder %s92, 0
      %s95 = sadd.s32 %s94, 1
      %s96 = scalar_select %p93, %s94, %s95
      %p99 = pneg %p93
      %p100 = scmp.eq.s32.totalorder %s16, 1
      %p101 = por %p99, %p100
      %p102 = scmp.ne.s32.totalorder %s94, %s97
      %p103 = scmp.eq.s32.totalorder %s16, 0
      %p104 = por %p102, %p103
      %p105 = scmp.ne.s32.totalorder %s94, %s97
      %p106 = scmp.eq.s32.totalorder %s21, 1
      %p107 = por %p105, %p106
      %p108 = scmp.ne.s32.totalorder %s97, %s98
      %p109 = scmp.eq.s32.totalorder %s21, 0
      %p110 = por %p108, %p109
      %p111 = scmp.ne.s32.totalorder %s97, %s98
      %p112 = scmp.eq.s32.totalorder %s22, 1
      %p113 = por %p111, %p112
      %p115 = scmp.ne.s32.totalorder %s98, %s114
      %p116 = scmp.eq.s32.totalorder %s22, 0
      %p117 = por %p115, %p116
      %p118 = scmp.le.s32.totalorder 1, %s16
      %p119 = scmp.lt.s32.totalorder %s16, 3
      %p120 = pnand %p118, %p119
      %p121 = pneg %p120
      // Predicated region
      $region9: #{tpu_custom_call.1} parent=5 // pred_check
        _
      $region10: #{tpu_custom_call.1} parent=5 // pred_check_branch
        %123 = sbr.rel (%p120) target = $region12
      $region11: #{tpu_custom_call.1} parent=5 // pred_region
        %s124 = ssub.s32 %s16, 1
        // Predicated region
        $region13: #{tpu_custom_call.1} parent=11 // pred_check
          %p125 = pneg %p63
        $region14: #{tpu_custom_call.1} parent=11 // pred_check_branch
          %127 = sbr.rel (%p125) target = $region16
        $region15: #{tpu_custom_call.1} parent=11 // pred_region
          %s129 = ssub.s32 32768, 32768
          %130 = vsyncadd [#allocation7], %s129
          %s131 = sshll.u32 [#allocation6], 4
          %s132 = int_to_ptr.vmem [resolvable:$true] %s131
          %137 = dma.hbm_to_vmem [thread:$0]  %s1, 32768, %s132, [#allocation7], 1024, 1024, 64
        $region16: #{tpu_custom_call.1} parent=11 // pred_fallthru
          _
        // Predicated region
        $region17: #{tpu_custom_call.1} parent=11 // pred_check
          %p138 = pneg %p84
        $region18: #{tpu_custom_call.1} parent=11 // pred_check_branch
          %140 = sbr.rel (%p138) target = $region20
        $region19: #{tpu_custom_call.1} parent=11 // pred_region
          %s142 = ssub.s32 128, 128
          %143 = vsyncadd [#allocation7], %s142
          %s145 = sshll.u32 [#allocation8], 4
          %s146 = int_to_ptr.vmem [resolvable:$true] %s145
          %148 = dma.hbm_to_vmem [thread:$0]  %s2, 128, %s146, [#allocation7]
        $region20: #{tpu_custom_call.1} parent=11 // pred_fallthru
          _
      $region12: #{tpu_custom_call.1} parent=5 // pred_fallthru
        _
      %p149 = scmp.lt.s32.totalorder %s16, 2
      // Predicated region
      $region21: #{tpu_custom_call.1} parent=5 // pred_check
        %p150 = pneg %p149
      $region22: #{tpu_custom_call.1} parent=5 // pred_check_branch
        %152 = sbr.rel (%p150) target = $region24
      $region23: #{tpu_custom_call.1} parent=5 // pred_region
        // Predicated region
        $region25: #{tpu_custom_call.1} parent=23 // pred_check
          %p153 = pneg %p36
        $region26: #{tpu_custom_call.1} parent=23 // pred_check_branch
          %155 = sbr.rel (%p153) target = $region28
        $region27: #{tpu_custom_call.1} parent=23 // pred_region
          %s156 = sand.u32 %s26, 1
          %s157 = scalar_lea.sflag [#allocation4], %s156
          %s158 = sand.u32 %s26, 1
          %s159 = smul.addr %s158, 8
          %s160 = scalar_lea.vmem [#allocation3], %s159
          %s162 = ssub.s32 128, 128
          %163 = vsyncadd %s157, %s162
          %s164 = smul.addr %s16, 2
          %s165 = smul.addr %s164, 64
          %s166 = scalar_lea.hbm %s0, %s165
          %s168 = sshll.u32 %s160, 4
          %s169 = int_to_ptr.vmem [resolvable:$true] %s168
          %171 = dma.hbm_to_vmem [thread:$0]  %s166, 128, %s169, %s157
        $region28: #{tpu_custom_call.1} parent=23 // pred_fallthru
          _
      $region24: #{tpu_custom_call.1} parent=5 // pred_fallthru
        _
      %p172 = scmp.le.s32.totalorder 1, %s16
      %p173 = scmp.lt.s32.totalorder %s16, 3
      %p174 = pnand %p172, %p173
      %p175 = pneg %p174
      // Predicated region
      $region29: #{tpu_custom_call.1} parent=5 // pred_check
        _
      $region30: #{tpu_custom_call.1} parent=5 // pred_check_branch
        %177 = sbr.rel (%p174) target = $region32
      $region31: #{tpu_custom_call.1} parent=5 // pred_region
        %s178 = ssub.s32 %s16, 1
        %s179 = sand.u32 %s29, 1
        %s180 = scalar_lea.sflag [#allocation4], %s179
        %s181 = sand.u32 %s29, 1
        %s182 = smul.addr %s181, 8
        %s183 = scalar_lea.vmem [#allocation3], %s182
        // Predicated region
        $region33: #{tpu_custom_call.1} parent=31 // pred_check
          %p184 = pneg %p42
        $region34: #{tpu_custom_call.1} parent=31 // pred_check_branch
          %186 = sbr.rel (%p184) target = $region36
        $region35: #{tpu_custom_call.1} parent=31 // pred_region
          %187 = dma.done %s180, 128
        $region36: #{tpu_custom_call.1} parent=31 // pred_fallthru
          _
        // Predicated region
        $region37: #{tpu_custom_call.1} parent=31 // pred_check
          %p188 = pneg %p63
        $region38: #{tpu_custom_call.1} parent=31 // pred_check_branch
          %190 = sbr.rel (%p188) target = $region40
        $region39: #{tpu_custom_call.1} parent=31 // pred_region
          %191 = dma.done [#allocation7], 32768
        $region40: #{tpu_custom_call.1} parent=31 // pred_fallthru
          _
        // Predicated region
        $region41: #{tpu_custom_call.1} parent=31 // pred_check
          %p192 = pneg %p84
        $region42: #{tpu_custom_call.1} parent=31 // pred_check_branch
          %194 = sbr.rel (%p192) target = $region44
        $region43: #{tpu_custom_call.1} parent=31 // pred_region
          %195 = dma.done [#allocation7], 128
        $region44: #{tpu_custom_call.1} parent=31 // pred_fallthru
          _
        %s196 = sand.u32 %s29, 1
        %s197 = scalar_lea.sflag [#allocation4], %s196
        %s198 = sand.u32 %s29, 1
        %s199 = smul.addr %s198, 8
        %s200 = scalar_lea.vmem [#allocation3], %s199
        %p201 = pneg %p42
        %p202 = pneg %p39
        %p203 = pneg %p63
        %p204 = pneg %p60
        %p205 = pneg %p84
        %p206 = pneg %p81
        %p207 = pneg %p110
        %p208 = pneg %p107
        %s209 = sand.u32 %s97, 1
        %s210 = scalar_lea.sflag [#allocation5], %s209
        %s211 = sand.u32 %s97, 1
        %s212 = smul.addr %s211, 64
        %s213 = scalar_lea.vmem [#allocation9], %s212
        %v214 = vld [vmem:[%s183] sm:$0xff]
        %v215 = vld [vmem:[#allocation6] sm:$0xff]
        %v216 = vld [vmem:[#allocation6 + $0x8] sm:$0xff]
        %v217 = vld [vmem:[#allocation6 + $0x10] sm:$0xff]
        %v218 = vld [vmem:[#allocation6 + $0x18] sm:$0xff]
        %v219 = vld [vmem:[#allocation6 + $0x20] sm:$0xff]
        %v220 = vld [vmem:[#allocation6 + $0x28] sm:$0xff]
        %v221 = vld [vmem:[#allocation6 + $0x30] sm:$0xff]
        %v222 = vld [vmem:[#allocation6 + $0x38] sm:$0xff]
        %v223 = vld [vmem:[#allocation6 + $0x40] sm:$0xff]
        %v224 = vld [vmem:[#allocation6 + $0x48] sm:$0xff]
        %v225 = vld [vmem:[#allocation6 + $0x50] sm:$0xff]
        %v226 = vld [vmem:[#allocation6 + $0x58] sm:$0xff]
        %v227 = vld [vmem:[#allocation6 + $0x60] sm:$0xff]
        %v228 = vld [vmem:[#allocation6 + $0x68] sm:$0xff]
        %v229 = vld [vmem:[#allocation6 + $0x70] sm:$0xff]
        %v230 = vld [vmem:[#allocation6 + $0x78] sm:$0xff]
        %v231 = vld [vmem:[#allocation6 + $0x80] sm:$0xff]
        %v232 = vld [vmem:[#allocation6 + $0x88] sm:$0xff]
        %v233 = vld [vmem:[#allocation6 + $0x90] sm:$0xff]
        %v234 = vld [vmem:[#allocation6 + $0x98] sm:$0xff]
        %v235 = vld [vmem:[#allocation6 + $0xa0] sm:$0xff]
        %v236 = vld [vmem:[#allocation6 + $0xa8] sm:$0xff]
        %v237 = vld [vmem:[#allocation6 + $0xb0] sm:$0xff]
        %v238 = vld [vmem:[#allocation6 + $0xb8] sm:$0xff]
        %v239 = vld [vmem:[#allocation6 + $0xc0] sm:$0xff]
        %v240 = vld [vmem:[#allocation6 + $0xc8] sm:$0xff]
        %v241 = vld [vmem:[#allocation6 + $0xd0] sm:$0xff]
        %v242 = vld [vmem:[#allocation6 + $0xd8] sm:$0xff]
        %v243 = vld [vmem:[#allocation6 + $0xe0] sm:$0xff]
        %v244 = vld [vmem:[#allocation6 + $0xe8] sm:$0xff]
        %v245 = vld [vmem:[#allocation6 + $0xf0] sm:$0xff]
        %v246 = vld [vmem:[#allocation6 + $0xf8] sm:$0xff]
        %v247 = vld [vmem:[#allocation6 + $0x100] sm:$0xff]
        %v248 = vld [vmem:[#allocation6 + $0x108] sm:$0xff]
        %v249 = vld [vmem:[#allocation6 + $0x110] sm:$0xff]
        %v250 = vld [vmem:[#allocation6 + $0x118] sm:$0xff]
        %v251 = vld [vmem:[#allocation6 + $0x120] sm:$0xff]
        %v252 = vld [vmem:[#allocation6 + $0x128] sm:$0xff]
        %v253 = vld [vmem:[#allocation6 + $0x130] sm:$0xff]
        %v254 = vld [vmem:[#allocation6 + $0x138] sm:$0xff]
        %v255 = vld [vmem:[#allocation6 + $0x140] sm:$0xff]
        %v256 = vld [vmem:[#allocation6 + $0x148] sm:$0xff]
        %v257 = vld [vmem:[#allocation6 + $0x150] sm:$0xff]
        %v258 = vld [vmem:[#allocation6 + $0x158] sm:$0xff]
        %v259 = vld [vmem:[#allocation6 + $0x160] sm:$0xff]
        %v260 = vld [vmem:[#allocation6 + $0x168] sm:$0xff]
        %v261 = vld [vmem:[#allocation6 + $0x170] sm:$0xff]
        %v262 = vld [vmem:[#allocation6 + $0x178] sm:$0xff]
        %v263 = vld [vmem:[#allocation6 + $0x180] sm:$0xff]
        %v264 = vld [vmem:[#allocation6 + $0x188] sm:$0xff]
        %v265 = vld [vmem:[#allocation6 + $0x190] sm:$0xff]
        %v266 = vld [vmem:[#allocation6 + $0x198] sm:$0xff]
        %v267 = vld [vmem:[#allocation6 + $0x1a0] sm:$0xff]
        %v268 = vld [vmem:[#allocation6 + $0x1a8] sm:$0xff]
        %v269 = vld [vmem:[#allocation6 + $0x1b0] sm:$0xff]
        %v270 = vld [vmem:[#allocation6 + $0x1b8] sm:$0xff]
        %v271 = vld [vmem:[#allocation6 + $0x1c0] sm:$0xff]
        %v272 = vld [vmem:[#allocation6 + $0x1c8] sm:$0xff]
        %v273 = vld [vmem:[#allocation6 + $0x1d0] sm:$0xff]
        %v274 = vld [vmem:[#allocation6 + $0x1d8] sm:$0xff]
        %v275 = vld [vmem:[#allocation6 + $0x1e0] sm:$0xff]
        %v276 = vld [vmem:[#allocation6 + $0x1e8] sm:$0xff]
        %v277 = vld [vmem:[#allocation6 + $0x1f0] sm:$0xff]
        %v278 = vld [vmem:[#allocation6 + $0x1f8] sm:$0xff]
        %v279 = vld [vmem:[#allocation6 + $0x200] sm:$0xff]
        %v280 = vld [vmem:[#allocation6 + $0x208] sm:$0xff]
        %v281 = vld [vmem:[#allocation6 + $0x210] sm:$0xff]
        %v282 = vld [vmem:[#allocation6 + $0x218] sm:$0xff]
        %v283 = vld [vmem:[#allocation6 + $0x220] sm:$0xff]
        %v284 = vld [vmem:[#allocation6 + $0x228] sm:$0xff]
        %v285 = vld [vmem:[#allocation6 + $0x230] sm:$0xff]
        %v286 = vld [vmem:[#allocation6 + $0x238] sm:$0xff]
        %v287 = vld [vmem:[#allocation6 + $0x240] sm:$0xff]
        %v288 = vld [vmem:[#allocation6 + $0x248] sm:$0xff]
        %v289 = vld [vmem:[#allocation6 + $0x250] sm:$0xff]
        %v290 = vld [vmem:[#allocation6 + $0x258] sm:$0xff]
        %v291 = vld [vmem:[#allocation6 + $0x260] sm:$0xff]
        %v292 = vld [vmem:[#allocation6 + $0x268] sm:$0xff]
        %v293 = vld [vmem:[#allocation6 + $0x270] sm:$0xff]
        %v294 = vld [vmem:[#allocation6 + $0x278] sm:$0xff]
        %v295 = vld [vmem:[#allocation6 + $0x280] sm:$0xff]
        %v296 = vld [vmem:[#allocation6 + $0x288] sm:$0xff]
        %v297 = vld [vmem:[#allocation6 + $0x290] sm:$0xff]
        %v298 = vld [vmem:[#allocation6 + $0x298] sm:$0xff]
        %v299 = vld [vmem:[#allocation6 + $0x2a0] sm:$0xff]
        %v300 = vld [vmem:[#allocation6 + $0x2a8] sm:$0xff]
        %v301 = vld [vmem:[#allocation6 + $0x2b0] sm:$0xff]
        %v302 = vld [vmem:[#allocation6 + $0x2b8] sm:$0xff]
        %v303 = vld [vmem:[#allocation6 + $0x2c0] sm:$0xff]
        %v304 = vld [vmem:[#allocation6 + $0x2c8] sm:$0xff]
        %v305 = vld [vmem:[#allocation6 + $0x2d0] sm:$0xff]
        %v306 = vld [vmem:[#allocation6 + $0x2d8] sm:$0xff]
        %v307 = vld [vmem:[#allocation6 + $0x2e0] sm:$0xff]
        %v308 = vld [vmem:[#allocation6 + $0x2e8] sm:$0xff]
        %v309 = vld [vmem:[#allocation6 + $0x2f0] sm:$0xff]
        %v310 = vld [vmem:[#allocation6 + $0x2f8] sm:$0xff]
        %v311 = vld [vmem:[#allocation6 + $0x300] sm:$0xff]
        %v312 = vld [vmem:[#allocation6 + $0x308] sm:$0xff]
        %v313 = vld [vmem:[#allocation6 + $0x310] sm:$0xff]
        %v314 = vld [vmem:[#allocation6 + $0x318] sm:$0xff]
        %v315 = vld [vmem:[#allocation6 + $0x320] sm:$0xff]
        %v316 = vld [vmem:[#allocation6 + $0x328] sm:$0xff]
        %v317 = vld [vmem:[#allocation6 + $0x330] sm:$0xff]
        %v318 = vld [vmem:[#allocation6 + $0x338] sm:$0xff]
        %v319 = vld [vmem:[#allocation6 + $0x340] sm:$0xff]
        %v320 = vld [vmem:[#allocation6 + $0x348] sm:$0xff]
        %v321 = vld [vmem:[#allocation6 + $0x350] sm:$0xff]
        %v322 = vld [vmem:[#allocation6 + $0x358] sm:$0xff]
        %v323 = vld [vmem:[#allocation6 + $0x360] sm:$0xff]
        %v324 = vld [vmem:[#allocation6 + $0x368] sm:$0xff]
        %v325 = vld [vmem:[#allocation6 + $0x370] sm:$0xff]
        %v326 = vld [vmem:[#allocation6 + $0x378] sm:$0xff]
        %v327 = vld [vmem:[#allocation6 + $0x380] sm:$0xff]
        %v328 = vld [vmem:[#allocation6 + $0x388] sm:$0xff]
        %v329 = vld [vmem:[#allocation6 + $0x390] sm:$0xff]
        %v330 = vld [vmem:[#allocation6 + $0x398] sm:$0xff]
        %v331 = vld [vmem:[#allocation6 + $0x3a0] sm:$0xff]
        %v332 = vld [vmem:[#allocation6 + $0x3a8] sm:$0xff]
        %v333 = vld [vmem:[#allocation6 + $0x3b0] sm:$0xff]
        %v334 = vld [vmem:[#allocation6 + $0x3b8] sm:$0xff]
        %v335 = vld [vmem:[#allocation6 + $0x3c0] sm:$0xff]
        %v336 = vld [vmem:[#allocation6 + $0x3c8] sm:$0xff]
        %v337 = vld [vmem:[#allocation6 + $0x3d0] sm:$0xff]
        %v338 = vld [vmem:[#allocation6 + $0x3d8] sm:$0xff]
        %v339 = vld [vmem:[#allocation6 + $0x3e0] sm:$0xff]
        %v340 = vld [vmem:[#allocation6 + $0x3e8] sm:$0xff]
        %v341 = vld [vmem:[#allocation6 + $0x3f0] sm:$0xff]
        %v342 = vld [vmem:[#allocation6 + $0x3f8] sm:$0xff]
        %v343 = vld [vmem:[#allocation6 + $0x400] sm:$0xff]
        %v344 = vld [vmem:[#allocation6 + $0x408] sm:$0xff]
        %v345 = vld [vmem:[#allocation6 + $0x410] sm:$0xff]
        %v346 = vld [vmem:[#allocation6 + $0x418] sm:$0xff]
        %v347 = vld [vmem:[#allocation6 + $0x420] sm:$0xff]
        %v348 = vld [vmem:[#allocation6 + $0x428] sm:$0xff]
        %v349 = vld [vmem:[#allocation6 + $0x430] sm:$0xff]
        %v350 = vld [vmem:[#allocation6 + $0x438] sm:$0xff]
        %v351 = vld [vmem:[#allocation6 + $0x440] sm:$0xff]
        %v352 = vld [vmem:[#allocation6 + $0x448] sm:$0xff]
        %v353 = vld [vmem:[#allocation6 + $0x450] sm:$0xff]
        %v354 = vld [vmem:[#allocation6 + $0x458] sm:$0xff]
        %v355 = vld [vmem:[#allocation6 + $0x460] sm:$0xff]
        %v356 = vld [vmem:[#allocation6 + $0x468] sm:$0xff]
        %v357 = vld [vmem:[#allocation6 + $0x470] sm:$0xff]
        %v358 = vld [vmem:[#allocation6 + $0x478] sm:$0xff]
        %v359 = vld [vmem:[#allocation6 + $0x480] sm:$0xff]
        %v360 = vld [vmem:[#allocation6 + $0x488] sm:$0xff]
        %v361 = vld [vmem:[#allocation6 + $0x490] sm:$0xff]
        %v362 = vld [vmem:[#allocation6 + $0x498] sm:$0xff]
        %v363 = vld [vmem:[#allocation6 + $0x4a0] sm:$0xff]
        %v364 = vld [vmem:[#allocation6 + $0x4a8] sm:$0xff]
        %v365 = vld [vmem:[#allocation6 + $0x4b0] sm:$0xff]
        %v366 = vld [vmem:[#allocation6 + $0x4b8] sm:$0xff]
        %v367 = vld [vmem:[#allocation6 + $0x4c0] sm:$0xff]
        %v368 = vld [vmem:[#allocation6 + $0x4c8] sm:$0xff]
        %v369 = vld [vmem:[#allocation6 + $0x4d0] sm:$0xff]
        %v370 = vld [vmem:[#allocation6 + $0x4d8] sm:$0xff]
        %v371 = vld [vmem:[#allocation6 + $0x4e0] sm:$0xff]
        %v372 = vld [vmem:[#allocation6 + $0x4e8] sm:$0xff]
        %v373 = vld [vmem:[#allocation6 + $0x4f0] sm:$0xff]
        %v374 = vld [vmem:[#allocation6 + $0x4f8] sm:$0xff]
        %v375 = vld [vmem:[#allocation6 + $0x500] sm:$0xff]
        %v376 = vld [vmem:[#allocation6 + $0x508] sm:$0xff]
        %v377 = vld [vmem:[#allocation6 + $0x510] sm:$0xff]
        %v378 = vld [vmem:[#allocation6 + $0x518] sm:$0xff]
        %v379 = vld [vmem:[#allocation6 + $0x520] sm:$0xff]
        %v380 = vld [vmem:[#allocation6 + $0x528] sm:$0xff]
        %v381 = vld [vmem:[#allocation6 + $0x530] sm:$0xff]
        %v382 = vld [vmem:[#allocation6 + $0x538] sm:$0xff]
        %v383 = vld [vmem:[#allocation6 + $0x540] sm:$0xff]
        %v384 = vld [vmem:[#allocation6 + $0x548] sm:$0xff]
        %v385 = vld [vmem:[#allocation6 + $0x550] sm:$0xff]
        %v386 = vld [vmem:[#allocation6 + $0x558] sm:$0xff]
        %v387 = vld [vmem:[#allocation6 + $0x560] sm:$0xff]
        %v388 = vld [vmem:[#allocation6 + $0x568] sm:$0xff]
        %v389 = vld [vmem:[#allocation6 + $0x570] sm:$0xff]
        %v390 = vld [vmem:[#allocation6 + $0x578] sm:$0xff]
        %v391 = vld [vmem:[#allocation6 + $0x580] sm:$0xff]
        %v392 = vld [vmem:[#allocation6 + $0x588] sm:$0xff]
        %v393 = vld [vmem:[#allocation6 + $0x590] sm:$0xff]
        %v394 = vld [vmem:[#allocation6 + $0x598] sm:$0xff]
        %v395 = vld [vmem:[#allocation6 + $0x5a0] sm:$0xff]
        %v396 = vld [vmem:[#allocation6 + $0x5a8] sm:$0xff]
        %v397 = vld [vmem:[#allocation6 + $0x5b0] sm:$0xff]
        %v398 = vld [vmem:[#allocation6 + $0x5b8] sm:$0xff]
        %v399 = vld [vmem:[#allocation6 + $0x5c0] sm:$0xff]
        %v400 = vld [vmem:[#allocation6 + $0x5c8] sm:$0xff]
        %v401 = vld [vmem:[#allocation6 + $0x5d0] sm:$0xff]
        %v402 = vld [vmem:[#allocation6 + $0x5d8] sm:$0xff]
        %v403 = vld [vmem:[#allocation6 + $0x5e0] sm:$0xff]
        %v404 = vld [vmem:[#allocation6 + $0x5e8] sm:$0xff]
        %v405 = vld [vmem:[#allocation6 + $0x5f0] sm:$0xff]
        %v406 = vld [vmem:[#allocation6 + $0x5f8] sm:$0xff]
        %v407 = vld [vmem:[#allocation6 + $0x600] sm:$0xff]
        %v408 = vld [vmem:[#allocation6 + $0x608] sm:$0xff]
        %v409 = vld [vmem:[#allocation6 + $0x610] sm:$0xff]
        %v410 = vld [vmem:[#allocation6 + $0x618] sm:$0xff]
        %v411 = vld [vmem:[#allocation6 + $0x620] sm:$0xff]
        %v412 = vld [vmem:[#allocation6 + $0x628] sm:$0xff]
        %v413 = vld [vmem:[#allocation6 + $0x630] sm:$0xff]
        %v414 = vld [vmem:[#allocation6 + $0x638] sm:$0xff]
        %v415 = vld [vmem:[#allocation6 + $0x640] sm:$0xff]
        %v416 = vld [vmem:[#allocation6 + $0x648] sm:$0xff]
        %v417 = vld [vmem:[#allocation6 + $0x650] sm:$0xff]
        %v418 = vld [vmem:[#allocation6 + $0x658] sm:$0xff]
        %v419 = vld [vmem:[#allocation6 + $0x660] sm:$0xff]
        %v420 = vld [vmem:[#allocation6 + $0x668] sm:$0xff]
        %v421 = vld [vmem:[#allocation6 + $0x670] sm:$0xff]
        %v422 = vld [vmem:[#allocation6 + $0x678] sm:$0xff]
        %v423 = vld [vmem:[#allocation6 + $0x680] sm:$0xff]
        %v424 = vld [vmem:[#allocation6 + $0x688] sm:$0xff]
        %v425 = vld [vmem:[#allocation6 + $0x690] sm:$0xff]
        %v426 = vld [vmem:[#allocation6 + $0x698] sm:$0xff]
        %v427 = vld [vmem:[#allocation6 + $0x6a0] sm:$0xff]
        %v428 = vld [vmem:[#allocation6 + $0x6a8] sm:$0xff]
        %v429 = vld [vmem:[#allocation6 + $0x6b0] sm:$0xff]
        %v430 = vld [vmem:[#allocation6 + $0x6b8] sm:$0xff]
        %v431 = vld [vmem:[#allocation6 + $0x6c0] sm:$0xff]
        %v432 = vld [vmem:[#allocation6 + $0x6c8] sm:$0xff]
        %v433 = vld [vmem:[#allocation6 + $0x6d0] sm:$0xff]
        %v434 = vld [vmem:[#allocation6 + $0x6d8] sm:$0xff]
        %v435 = vld [vmem:[#allocation6 + $0x6e0] sm:$0xff]
        %v436 = vld [vmem:[#allocation6 + $0x6e8] sm:$0xff]
        %v437 = vld [vmem:[#allocation6 + $0x6f0] sm:$0xff]
        %v438 = vld [vmem:[#allocation6 + $0x6f8] sm:$0xff]
        %v439 = vld [vmem:[#allocation6 + $0x700] sm:$0xff]
        %v440 = vld [vmem:[#allocation6 + $0x708] sm:$0xff]
        %v441 = vld [vmem:[#allocation6 + $0x710] sm:$0xff]
        %v442 = vld [vmem:[#allocation6 + $0x718] sm:$0xff]
        %v443 = vld [vmem:[#allocation6 + $0x720] sm:$0xff]
        %v444 = vld [vmem:[#allocation6 + $0x728] sm:$0xff]
        %v445 = vld [vmem:[#allocation6 + $0x730] sm:$0xff]
        %v446 = vld [vmem:[#allocation6 + $0x738] sm:$0xff]
        %v447 = vld [vmem:[#allocation6 + $0x740] sm:$0xff]
        %v448 = vld [vmem:[#allocation6 + $0x748] sm:$0xff]
        %v449 = vld [vmem:[#allocation6 + $0x750] sm:$0xff]
        %v450 = vld [vmem:[#allocation6 + $0x758] sm:$0xff]
        %v451 = vld [vmem:[#allocation6 + $0x760] sm:$0xff]
        %v452 = vld [vmem:[#allocation6 + $0x768] sm:$0xff]
        %v453 = vld [vmem:[#allocation6 + $0x770] sm:$0xff]
        %v454 = vld [vmem:[#allocation6 + $0x778] sm:$0xff]
        %v455 = vld [vmem:[#allocation6 + $0x780] sm:$0xff]
        %v456 = vld [vmem:[#allocation6 + $0x788] sm:$0xff]
        %v457 = vld [vmem:[#allocation6 + $0x790] sm:$0xff]
        %v458 = vld [vmem:[#allocation6 + $0x798] sm:$0xff]
        %v459 = vld [vmem:[#allocation6 + $0x7a0] sm:$0xff]
        %v460 = vld [vmem:[#allocation6 + $0x7a8] sm:$0xff]
        %v461 = vld [vmem:[#allocation6 + $0x7b0] sm:$0xff]
        %v462 = vld [vmem:[#allocation6 + $0x7b8] sm:$0xff]
        %v463 = vld [vmem:[#allocation6 + $0x7c0] sm:$0xff]
        %v464 = vld [vmem:[#allocation6 + $0x7c8] sm:$0xff]
        %v465 = vld [vmem:[#allocation6 + $0x7d0] sm:$0xff]
        %v466 = vld [vmem:[#allocation6 + $0x7d8] sm:$0xff]
        %v467 = vld [vmem:[#allocation6 + $0x7e0] sm:$0xff]
        %v468 = vld [vmem:[#allocation6 + $0x7e8] sm:$0xff]
        %v469 = vld [vmem:[#allocation6 + $0x7f0] sm:$0xff]
        %v470 = vld [vmem:[#allocation6 + $0x7f8] sm:$0xff]
        %v472 = vcombine.high %v214, %v214
        %474 = vmatprep.subr.mxu0 %v216
        %475 = vmatpush1.msra.mxu0 %v215
        %476 = vmatprep.subr.mxu0 %v224
        %477 = vmatpush1.msra.mxu0 %v223
        %478 = vmatprep.subr.mxu0 %v232
        %479 = vmatpush1.msra.mxu0 %v231
        %480 = vmatprep.subr.mxu0 %v240
        %481 = vmatpush1.msra.mxu0 %v239
        %482 = vmatprep.subr.mxu0 %v248
        %483 = vmatpush1.msra.mxu0 %v247
        %484 = vmatprep.subr.mxu0 %v256
        %485 = vmatpush1.msra.mxu0 %v255
        %486 = vmatprep.subr.mxu0 %v264
        %487 = vmatpush1.msra.mxu0 %v263
        %488 = vmatprep.subr.mxu0 %v272
        %489 = vmatpush1.msra.mxu0 %v271
        %490 = vmatprep.subr.mxu0 %v280
        %491 = vmatpush1.msra.mxu0 %v279
        %492 = vmatprep.subr.mxu0 %v288
        %493 = vmatpush1.msra.mxu0 %v287
        %494 = vmatprep.subr.mxu0 %v296
        %495 = vmatpush1.msra.mxu0 %v295
        %496 = vmatprep.subr.mxu0 %v304
        %497 = vmatpush1.msra.mxu0 %v303
        %498 = vmatprep.subr.mxu0 %v312
        %499 = vmatpush1.msra.mxu0 %v311
        %500 = vmatprep.subr.mxu0 %v320
        %501 = vmatpush1.msra.mxu0 %v319
        %502 = vmatprep.subr.mxu0 %v328
        %503 = vmatpush1.msra.mxu0 %v327
        %504 = vmatprep.subr.mxu0 %v336
        %505 = vmatpush1.msra.mxu0 %v335
        %506 = vmatprep.subr.mxu0 %v344
        %507 = vmatpush1.msra.mxu0 %v343
        %508 = vmatprep.subr.mxu0 %v352
        %509 = vmatpush1.msra.mxu0 %v351
        %510 = vmatprep.subr.mxu0 %v360
        %511 = vmatpush1.msra.mxu0 %v359
        %512 = vmatprep.subr.mxu0 %v368
        %513 = vmatpush1.msra.mxu0 %v367
        %514 = vmatprep.subr.mxu0 %v376
        %515 = vmatpush1.msra.mxu0 %v375
        %516 = vmatprep.subr.mxu0 %v384
        %517 = vmatpush1.msra.mxu0 %v383
        %518 = vmatprep.subr.mxu0 %v392
        %519 = vmatpush1.msra.mxu0 %v391
        %520 = vmatprep.subr.mxu0 %v400
        %521 = vmatpush1.msra.mxu0 %v399
        %522 = vmatprep.subr.mxu0 %v408
        %523 = vmatpush1.msra.mxu0 %v407
        %524 = vmatprep.subr.mxu0 %v416
        %525 = vmatpush1.msra.mxu0 %v415
        %526 = vmatprep.subr.mxu0 %v424
        %527 = vmatpush1.msra.mxu0 %v423
        %528 = vmatprep.subr.mxu0 %v432
        %529 = vmatpush1.msra.mxu0 %v431
        %530 = vmatprep.subr.mxu0 %v440
        %531 = vmatpush1.msra.mxu0 %v439
        %532 = vmatprep.subr.mxu0 %v448
        %533 = vmatpush1.msra.mxu0 %v447
        %534 = vmatprep.subr.mxu0 %v456
        %535 = vmatpush1.msra.mxu0 %v455
        %536 = vmatprep.subr.mxu0 %v464
        %537 = vmatpush1.msra.mxu0 %v463
        %538 = vmatprep.mubr.f32.mxu0 %v472
        %539 = vmatmul.mubr.f32.gmra.mrb[0].mxu0 %v214
        %v540 = vpop.f32.mrb[0].mxu0
        %v541 = vadd.f32 0.0, %v540
        %v542 = vpop.f32.mrb[0].mxu0
        %v543 = vadd.f32 0.0, %v542
        %544 = vdwg.mxu0
        %545 = vmatprep.subr.mxu0 %v218
        %546 = vmatpush1.msra.mxu0 %v217
        %547 = vmatprep.subr.mxu0 %v226
        %548 = vmatpush1.msra.mxu0 %v225
        %549 = vmatprep.subr.mxu0 %v234
        %550 = vmatpush1.msra.mxu0 %v233
        %551 = vmatprep.subr.mxu0 %v242
        %552 = vmatpush1.msra.mxu0 %v241
        %553 = vmatprep.subr.mxu0 %v250
        %554 = vmatpush1.msra.mxu0 %v249
        %555 = vmatprep.subr.mxu0 %v258
        %556 = vmatpush1.msra.mxu0 %v257
        %557 = vmatprep.subr.mxu0 %v266
        %558 = vmatpush1.msra.mxu0 %v265
        %559 = vmatprep.subr.mxu0 %v274
        %560 = vmatpush1.msra.mxu0 %v273
        %561 = vmatprep.subr.mxu0 %v282
        %562 = vmatpush1.msra.mxu0 %v281
        %563 = vmatprep.subr.mxu0 %v290
        %564 = vmatpush1.msra.mxu0 %v289
        %565 = vmatprep.subr.mxu0 %v298
        %566 = vmatpush1.msra.mxu0 %v297
        %567 = vmatprep.subr.mxu0 %v306
        %568 = vmatpush1.msra.mxu0 %v305
        %569 = vmatprep.subr.mxu0 %v314
        %570 = vmatpush1.msra.mxu0 %v313
        %571 = vmatprep.subr.mxu0 %v322
        %572 = vmatpush1.msra.mxu0 %v321
        %573 = vmatprep.subr.mxu0 %v330
        %574 = vmatpush1.msra.mxu0 %v329
        %575 = vmatprep.subr.mxu0 %v338
        %576 = vmatpush1.msra.mxu0 %v337
        %577 = vmatprep.subr.mxu0 %v346
        %578 = vmatpush1.msra.mxu0 %v345
        %579 = vmatprep.subr.mxu0 %v354
        %580 = vmatpush1.msra.mxu0 %v353
        %581 = vmatprep.subr.mxu0 %v362
        %582 = vmatpush1.msra.mxu0 %v361
        %583 = vmatprep.subr.mxu0 %v370
        %584 = vmatpush1.msra.mxu0 %v369
        %585 = vmatprep.subr.mxu0 %v378
        %586 = vmatpush1.msra.mxu0 %v377
        %587 = vmatprep.subr.mxu0 %v386
        %588 = vmatpush1.msra.mxu0 %v385
        %589 = vmatprep.subr.mxu0 %v394
        %590 = vmatpush1.msra.mxu0 %v393
        %591 = vmatprep.subr.mxu0 %v402
        %592 = vmatpush1.msra.mxu0 %v401
        %593 = vmatprep.subr.mxu0 %v410
        %594 = vmatpush1.msra.mxu0 %v409
        %595 = vmatprep.subr.mxu0 %v418
        %596 = vmatpush1.msra.mxu0 %v417
        %597 = vmatprep.subr.mxu0 %v426
        %598 = vmatpush1.msra.mxu0 %v425
        %599 = vmatprep.subr.mxu0 %v434
        %600 = vmatpush1.msra.mxu0 %v433
        %601 = vmatprep.subr.mxu0 %v442
        %602 = vmatpush1.msra.mxu0 %v441
        %603 = vmatprep.subr.mxu0 %v450
        %604 = vmatpush1.msra.mxu0 %v449
        %605 = vmatprep.subr.mxu0 %v458
        %606 = vmatpush1.msra.mxu0 %v457
        %607 = vmatprep.subr.mxu0 %v466
        %608 = vmatpush1.msra.mxu0 %v465
        %609 = vmatprep.mubr.f32.mxu0 %v472
        %610 = vmatmul.mubr.f32.gmra.mrb[0].mxu0 %v214
        %v611 = vpop.f32.mrb[0].mxu0
        %v612 = vadd.f32 0.0, %v611
        %v613 = vpop.f32.mrb[0].mxu0
        %v614 = vadd.f32 0.0, %v613
        %615 = vdwg.mxu0
        %616 = vmatprep.subr.mxu0 %v220
        %617 = vmatpush1.msra.mxu0 %v219
        %618 = vmatprep.subr.mxu0 %v228
        %619 = vmatpush1.msra.mxu0 %v227
        %620 = vmatprep.subr.mxu0 %v236
        %621 = vmatpush1.msra.mxu0 %v235
        %622 = vmatprep.subr.mxu0 %v244
        %623 = vmatpush1.msra.mxu0 %v243
        %624 = vmatprep.subr.mxu0 %v252
        %625 = vmatpush1.msra.mxu0 %v251
        %626 = vmatprep.subr.mxu0 %v260
        %627 = vmatpush1.msra.mxu0 %v259
        %628 = vmatprep.subr.mxu0 %v268
        %629 = vmatpush1.msra.mxu0 %v267
        %630 = vmatprep.subr.mxu0 %v276
        %631 = vmatpush1.msra.mxu0 %v275
        %632 = vmatprep.subr.mxu0 %v284
        %633 = vmatpush1.msra.mxu0 %v283
        %634 = vmatprep.subr.mxu0 %v292
        %635 = vmatpush1.msra.mxu0 %v291
        %636 = vmatprep.subr.mxu0 %v300
        %637 = vmatpush1.msra.mxu0 %v299
        %638 = vmatprep.subr.mxu0 %v308
        %639 = vmatpush1.msra.mxu0 %v307
        %640 = vmatprep.subr.mxu0 %v316
        %641 = vmatpush1.msra.mxu0 %v315
        %642 = vmatprep.subr.mxu0 %v324
        %643 = vmatpush1.msra.mxu0 %v323
        %644 = vmatprep.subr.mxu0 %v332
        %645 = vmatpush1.msra.mxu0 %v331
        %646 = vmatprep.subr.mxu0 %v340
        %647 = vmatpush1.msra.mxu0 %v339
        %648 = vmatprep.subr.mxu0 %v348
        %649 = vmatpush1.msra.mxu0 %v347
        %650 = vmatprep.subr.mxu0 %v356
        %651 = vmatpush1.msra.mxu0 %v355
        %652 = vmatprep.subr.mxu0 %v364
        %653 = vmatpush1.msra.mxu0 %v363
        %654 = vmatprep.subr.mxu0 %v372
        %655 = vmatpush1.msra.mxu0 %v371
        %656 = vmatprep.subr.mxu0 %v380
        %657 = vmatpush1.msra.mxu0 %v379
        %658 = vmatprep.subr.mxu0 %v388
        %659 = vmatpush1.msra.mxu0 %v387
        %660 = vmatprep.subr.mxu0 %v396
        %661 = vmatpush1.msra.mxu0 %v395
        %662 = vmatprep.subr.mxu0 %v404
        %663 = vmatpush1.msra.mxu0 %v403
        %664 = vmatprep.subr.mxu0 %v412
        %665 = vmatpush1.msra.mxu0 %v411
        %666 = vmatprep.subr.mxu0 %v420
        %667 = vmatpush1.msra.mxu0 %v419
        %668 = vmatprep.subr.mxu0 %v428
        %669 = vmatpush1.msra.mxu0 %v427
        %670 = vmatprep.subr.mxu0 %v436
        %671 = vmatpush1.msra.mxu0 %v435
        %672 = vmatprep.subr.mxu0 %v444
        %673 = vmatpush1.msra.mxu0 %v443
        %674 = vmatprep.subr.mxu0 %v452
        %675 = vmatpush1.msra.mxu0 %v451
        %676 = vmatprep.subr.mxu0 %v460
        %677 = vmatpush1.msra.mxu0 %v459
        %678 = vmatprep.subr.mxu0 %v468
        %679 = vmatpush1.msra.mxu0 %v467
        %680 = vmatprep.mubr.f32.mxu0 %v472
        %681 = vmatmul.mubr.f32.gmra.mrb[0].mxu0 %v214
        %v682 = vpop.f32.mrb[0].mxu0
        %v683 = vadd.f32 0.0, %v682
        %v684 = vpop.f32.mrb[0].mxu0
        %v685 = vadd.f32 0.0, %v684
        %686 = vdwg.mxu0
        %687 = vmatprep.subr.mxu0 %v222
        %688 = vmatpush1.msra.mxu0 %v221
        %689 = vmatprep.subr.mxu0 %v230
        %690 = vmatpush1.msra.mxu0 %v229
        %691 = vmatprep.subr.mxu0 %v238
        %692 = vmatpush1.msra.mxu0 %v237
        %693 = vmatprep.subr.mxu0 %v246
        %694 = vmatpush1.msra.mxu0 %v245
        %695 = vmatprep.subr.mxu0 %v254
        %696 = vmatpush1.msra.mxu0 %v253
        %697 = vmatprep.subr.mxu0 %v262
        %698 = vmatpush1.msra.mxu0 %v261
        %699 = vmatprep.subr.mxu0 %v270
        %700 = vmatpush1.msra.mxu0 %v269
        %701 = vmatprep.subr.mxu0 %v278
        %702 = vmatpush1.msra.mxu0 %v277
        %703 = vmatprep.subr.mxu0 %v286
        %704 = vmatpush1.msra.mxu0 %v285
        %705 = vmatprep.subr.mxu0 %v294
        %706 = vmatpush1.msra.mxu0 %v293
        %707 = vmatprep.subr.mxu0 %v302
        %708 = vmatpush1.msra.mxu0 %v301
        %709 = vmatprep.subr.mxu0 %v310
        %710 = vmatpush1.msra.mxu0 %v309
        %711 = vmatprep.subr.mxu0 %v318
        %712 = vmatpush1.msra.mxu0 %v317
        %713 = vmatprep.subr.mxu0 %v326
        %714 = vmatpush1.msra.mxu0 %v325
        %715 = vmatprep.subr.mxu0 %v334
        %716 = vmatpush1.msra.mxu0 %v333
        %717 = vmatprep.subr.mxu0 %v342
        %718 = vmatpush1.msra.mxu0 %v341
        %719 = vmatprep.subr.mxu0 %v350
        %720 = vmatpush1.msra.mxu0 %v349
        %721 = vmatprep.subr.mxu0 %v358
        %722 = vmatpush1.msra.mxu0 %v357
        %723 = vmatprep.subr.mxu0 %v366
        %724 = vmatpush1.msra.mxu0 %v365
        %725 = vmatprep.subr.mxu0 %v374
        %726 = vmatpush1.msra.mxu0 %v373
        %727 = vmatprep.subr.mxu0 %v382
        %728 = vmatpush1.msra.mxu0 %v381
        %729 = vmatprep.subr.mxu0 %v390
        %730 = vmatpush1.msra.mxu0 %v389
        %731 = vmatprep.subr.mxu0 %v398
        %732 = vmatpush1.msra.mxu0 %v397
        %733 = vmatprep.subr.mxu0 %v406
        %734 = vmatpush1.msra.mxu0 %v405
        %735 = vmatprep.subr.mxu0 %v414
        %736 = vmatpush1.msra.mxu0 %v413
        %737 = vmatprep.subr.mxu0 %v422
        %738 = vmatpush1.msra.mxu0 %v421
        %739 = vmatprep.subr.mxu0 %v430
        %740 = vmatpush1.msra.mxu0 %v429
        %741 = vmatprep.subr.mxu0 %v438
        %742 = vmatpush1.msra.mxu0 %v437
        %743 = vmatprep.subr.mxu0 %v446
        %744 = vmatpush1.msra.mxu0 %v445
        %745 = vmatprep.subr.mxu0 %v454
        %746 = vmatpush1.msra.mxu0 %v453
        %747 = vmatprep.subr.mxu0 %v462
        %748 = vmatpush1.msra.mxu0 %v461
        %749 = vmatprep.subr.mxu0 %v470
        %750 = vmatpush1.msra.mxu0 %v469
        %751 = vmatprep.mubr.f32.mxu0 %v472
        %752 = vmatmul.mubr.f32.gmra.mrb[0].mxu0 %v214
        %v753 = vpop.f32.mrb[0].mxu0
        %v754 = vadd.f32 0.0, %v753
        %v755 = vpop.f32.mrb[0].mxu0
        %v756 = vadd.f32 0.0, %v755
        %757 = vdwg.mxu0
        %v758 = vlaneseq
        %v759 = vand.u32 %v758, 127
        %v760 = vadd.s32 %v759, 128
        %v761 = vadd.s32 %v759, 256
        %v762 = vadd.s32 %v759, 384
        %v763 = vadd.s32 %v759, 512
        %v764 = vadd.s32 %v759, 640
        %v765 = vadd.s32 %v759, 768
        %v766 = vadd.s32 %v759, 896
        %vm767 = vcmp.lt.s32.totalorder %v759, 0
        %v768 = vsub.s32 0, %v759
        %v769 = vsel %vm767, %v768, %v759
        %v770 = vshrl.u32 %v769, 5
        %v771 = vand.u32 %v769, 31
        %v772 = vsub.s32 0, %v771
        %v773 = vsel %vm767, %v772, %v771
        %vm774 = vcmp.lt.s32.totalorder %v760, 0
        %v775 = vsub.s32 0, %v760
        %v776 = vsel %vm774, %v775, %v760
        %v777 = vshrl.u32 %v776, 5
        %v778 = vand.u32 %v776, 31
        %v779 = vsub.s32 0, %v778
        %v780 = vsel %vm774, %v779, %v778
        %vm781 = vcmp.lt.s32.totalorder %v761, 0
        %v782 = vsub.s32 0, %v761
        %v783 = vsel %vm781, %v782, %v761
        %v784 = vshrl.u32 %v783, 5
        %v785 = vand.u32 %v783, 31
        %v786 = vsub.s32 0, %v785
        %v787 = vsel %vm781, %v786, %v785
        %vm788 = vcmp.lt.s32.totalorder %v762, 0
        %v789 = vsub.s32 0, %v762
        %v790 = vsel %vm788, %v789, %v762
        %v791 = vshrl.u32 %v790, 5
        %v792 = vand.u32 %v790, 31
        %v793 = vsub.s32 0, %v792
        %v794 = vsel %vm788, %v793, %v792
        %vm795 = vcmp.lt.s32.totalorder %v763, 0
        %v796 = vsub.s32 0, %v763
        %v797 = vsel %vm795, %v796, %v763
        %v798 = vshrl.u32 %v797, 5
        %v799 = vand.u32 %v797, 31
        %v800 = vsub.s32 0, %v799
        %v801 = vsel %vm795, %v800, %v799
        %vm802 = vcmp.lt.s32.totalorder %v764, 0
        %v803 = vsub.s32 0, %v764
        %v804 = vsel %vm802, %v803, %v764
        %v805 = vshrl.u32 %v804, 5
        %v806 = vand.u32 %v804, 31
        %v807 = vsub.s32 0, %v806
        %v808 = vsel %vm802, %v807, %v806
        %vm809 = vcmp.lt.s32.totalorder %v765, 0
        %v810 = vsub.s32 0, %v765
        %v811 = vsel %vm809, %v810, %v765
        %v812 = vshrl.u32 %v811, 5
        %v813 = vand.u32 %v811, 31
        %v814 = vsub.s32 0, %v813
        %v815 = vsel %vm809, %v814, %v813
        %vm816 = vcmp.lt.s32.totalorder %v766, 0
        %v817 = vsub.s32 0, %v766
        %v818 = vsel %vm816, %v817, %v766
        %v819 = vshrl.u32 %v818, 5
        %v820 = vand.u32 %v818, 31
        %v821 = vsub.s32 0, %v820
        %v822 = vsel %vm816, %v821, %v820
        %vm823 = vcmp.ne.s32.totalorder %v773, 0
        %vm824 = vcmp.ne.s32.totalorder %v780, 0
        %vm825 = vcmp.ne.s32.totalorder %v787, 0
        %vm826 = vcmp.ne.s32.totalorder %v794, 0
        %vm827 = vcmp.ne.s32.totalorder %v801, 0
        %vm828 = vcmp.ne.s32.totalorder %v808, 0
        %vm829 = vcmp.ne.s32.totalorder %v815, 0
        %vm830 = vcmp.ne.s32.totalorder %v822, 0
        %vm831 = vcmp.lt.s32.totalorder %v773, 0
        %vm832 = vcmp.lt.s32.totalorder %v780, 0
        %vm833 = vcmp.lt.s32.totalorder %v787, 0
        %vm834 = vcmp.lt.s32.totalorder %v794, 0
        %vm835 = vcmp.lt.s32.totalorder %v801, 0
        %vm836 = vcmp.lt.s32.totalorder %v808, 0
        %vm837 = vcmp.lt.s32.totalorder %v815, 0
        %vm838 = vcmp.lt.s32.totalorder %v822, 0
        %vm839 = vmand %vm831, %vm823
        %vm840 = vmand %vm832, %vm824
        %vm841 = vmand %vm833, %vm825
        %vm842 = vmand %vm834, %vm826
        %vm843 = vmand %vm835, %vm827
        %vm844 = vmand %vm836, %vm828
        %vm845 = vmand %vm837, %vm829
        %vm846 = vmand %vm838, %vm830
        %v847 = vadd.s32 %v773, 32
        %v848 = vadd.s32 %v780, 32
        %v849 = vadd.s32 %v787, 32
        %v850 = vadd.s32 %v794, 32
        %v851 = vadd.s32 %v801, 32
        %v852 = vadd.s32 %v808, 32
        %v853 = vadd.s32 %v815, 32
        %v854 = vadd.s32 %v822, 32
        %v855 = vsel %vm839, %v847, %v773
        %v856 = vsel %vm840, %v848, %v780
        %v857 = vsel %vm841, %v849, %v787
        %v858 = vsel %vm842, %v850, %v794
        %v859 = vsel %vm843, %v851, %v801
        %v860 = vsel %vm844, %v852, %v808
        %v861 = vsel %vm845, %v853, %v815
        %v862 = vsel %vm846, %v854, %v822
        %vm863 = vcmp.eq.s32.totalorder %v855, 0
        %vm864 = vcmp.eq.s32.totalorder %v856, 0
        %vm865 = vcmp.eq.s32.totalorder %v857, 0
        %vm866 = vcmp.eq.s32.totalorder %v858, 0
        %vm867 = vcmp.eq.s32.totalorder %v859, 0
        %vm868 = vcmp.eq.s32.totalorder %v860, 0
        %vm869 = vcmp.eq.s32.totalorder %v861, 0
        %vm870 = vcmp.eq.s32.totalorder %v862, 0
        %871 = vrot.lane.b32.xlu0 %v541, 1
        %v872 = vpop.permute.xlu0 %871
        %873 = vrot.lane.b32.xlu0 %v543, 1
        %v874 = vpop.permute.xlu0 %873
        %875 = vrot.lane.b32.xlu0 %v612, 1
        %v876 = vpop.permute.xlu0 %875
        %877 = vrot.lane.b32.xlu0 %v614, 1
        %v878 = vpop.permute.xlu0 %877
        %879 = vrot.lane.b32.xlu0 %v683, 1
        %v880 = vpop.permute.xlu0 %879
        %881 = vrot.lane.b32.xlu0 %v685, 1
        %v882 = vpop.permute.xlu0 %881
        %883 = vrot.lane.b32.xlu0 %v754, 1
        %v884 = vpop.permute.xlu0 %883
        %885 = vrot.lane.b32.xlu0 %v756, 1
        %v886 = vpop.permute.xlu0 %885
        %vm887 = vcmp.lt.s32.totalorder %v759, 1
        %v888 = vsel %vm887, %v884, %v886
        %v889 = vsel %vm887, %v882, %v884
        %v890 = vsel %vm887, %v880, %v882
        %v891 = vsel %vm887, %v878, %v880
        %v892 = vsel %vm887, %v876, %v878
        %v893 = vsel %vm887, %v874, %v876
        %v894 = vsel %vm887, %v872, %v874
        %v895 = vsel %vm887, %v886, %v872
        %v896 = vsel %vm863, 0.0, %v895
        %v897 = vsel %vm864, 0.0, %v894
        %v898 = vsel %vm865, 0.0, %v893
        %v899 = vsel %vm866, 0.0, %v892
        %v900 = vsel %vm867, 0.0, %v891
        %v901 = vsel %vm868, 0.0, %v890
        %v902 = vsel %vm869, 0.0, %v889
        %v903 = vsel %vm870, 0.0, %v888
        %vm904 = vcmp.eq.s32.totalorder %v855, 31
        %vm905 = vcmp.eq.s32.totalorder %v856, 31
        %vm906 = vcmp.eq.s32.totalorder %v857, 31
        %vm907 = vcmp.eq.s32.totalorder %v858, 31
        %vm908 = vcmp.eq.s32.totalorder %v859, 31
        %vm909 = vcmp.eq.s32.totalorder %v860, 31
        %vm910 = vcmp.eq.s32.totalorder %v861, 31
        %vm911 = vcmp.eq.s32.totalorder %v862, 31
        %912 = vrot.lane.b32.xlu0 %v541, 127
        %v913 = vpop.permute.xlu0 %912
        %914 = vrot.lane.b32.xlu0 %v543, 127
        %v915 = vpop.permute.xlu0 %914
        %916 = vrot.lane.b32.xlu0 %v612, 127
        %v917 = vpop.permute.xlu0 %916
        %918 = vrot.lane.b32.xlu0 %v614, 127
        %v919 = vpop.permute.xlu0 %918
        %920 = vrot.lane.b32.xlu0 %v683, 127
        %v921 = vpop.permute.xlu0 %920
        %922 = vrot.lane.b32.xlu0 %v685, 127
        %v923 = vpop.permute.xlu0 %922
        %924 = vrot.lane.b32.xlu0 %v754, 127
        %v925 = vpop.permute.xlu0 %924
        %926 = vrot.lane.b32.xlu0 %v756, 127
        %v927 = vpop.permute.xlu0 %926
        %vm928 = vcmp.lt.s32.totalorder %v759, 127
        %v929 = vsel %vm928, %v925, %v927
        %v930 = vsel %vm928, %v923, %v925
        %v931 = vsel %vm928, %v921, %v923
        %v932 = vsel %vm928, %v919, %v921
        %v933 = vsel %vm928, %v917, %v919
        %v934 = vsel %vm928, %v915, %v917
        %v935 = vsel %vm928, %v913, %v915
        %v936 = vsel %vm928, %v927, %v913
        %v937 = vsel %vm904, 0.0, %v935
        %v938 = vsel %vm905, 0.0, %v934
        %v939 = vsel %vm906, 0.0, %v933
        %v940 = vsel %vm907, 0.0, %v932
        %v941 = vsel %vm908, 0.0, %v931
        %v942 = vsel %vm909, 0.0, %v930
        %v943 = vsel %vm910, 0.0, %v929
        %v944 = vsel %vm911, 0.0, %v936
        %vm945 = vcmp.lt.s32.totalorder %v759, 32
        %vm946 = vcmp.lt.s32.totalorder %v760, 32
        %vm947 = vcmp.lt.s32.totalorder %v761, 32
        %vm948 = vcmp.lt.s32.totalorder %v762, 32
        %vm949 = vcmp.lt.s32.totalorder %v763, 32
        %vm950 = vcmp.lt.s32.totalorder %v764, 32
        %vm951 = vcmp.lt.s32.totalorder %v765, 32
        %vm952 = vcmp.lt.s32.totalorder %v766, 32
        %953 = vrot.lane.b32.xlu0 %v896, 32
        %v954 = vpop.permute.xlu0 %953
        %955 = vrot.lane.b32.xlu0 %v897, 32
        %v956 = vpop.permute.xlu0 %955
        %957 = vrot.lane.b32.xlu0 %v898, 32
        %v958 = vpop.permute.xlu0 %957
        %959 = vrot.lane.b32.xlu0 %v899, 32
        %v960 = vpop.permute.xlu0 %959
        %961 = vrot.lane.b32.xlu0 %v900, 32
        %v962 = vpop.permute.xlu0 %961
        %963 = vrot.lane.b32.xlu0 %v901, 32
        %v964 = vpop.permute.xlu0 %963
        %965 = vrot.lane.b32.xlu0 %v902, 32
        %v966 = vpop.permute.xlu0 %965
        %967 = vrot.lane.b32.xlu0 %v903, 32
        %v968 = vpop.permute.xlu0 %967
        %v969 = vsel %vm945, %v966, %v968
        %v970 = vsel %vm945, %v964, %v966
        %v971 = vsel %vm945, %v962, %v964
        %v972 = vsel %vm945, %v960, %v962
        %v973 = vsel %vm945, %v958, %v960
        %v974 = vsel %vm945, %v956, %v958
        %v975 = vsel %vm945, %v954, %v956
        %v976 = vsel %vm945, %v968, %v954
        %v977 = vsel %vm945, 0.0, %v976
        %v978 = vsel %vm946, 0.0, %v975
        %v979 = vsel %vm947, 0.0, %v974
        %v980 = vsel %vm948, 0.0, %v973
        %v981 = vsel %vm949, 0.0, %v972
        %v982 = vsel %vm950, 0.0, %v971
        %v983 = vsel %vm951, 0.0, %v970
        %v984 = vsel %vm952, 0.0, %v969
        %985 = vst [vmem:[#allocation2] sm:$0xf] %v977
        %986 = vst [vmem:[#allocation2 + $0x8] sm:$0xf] %v978
        %987 = vst [vmem:[#allocation2 + $0x10] sm:$0xf] %v979
        %988 = vst [vmem:[#allocation2 + $0x18] sm:$0xf] %v980
        %989 = vst [vmem:[#allocation2 + $0x20] sm:$0xf] %v981
        %990 = vst [vmem:[#allocation2 + $0x28] sm:$0xf] %v982
        %991 = vst [vmem:[#allocation2 + $0x30] sm:$0xf] %v983
        %992 = vst [vmem:[#allocation2 + $0x38] sm:$0xf] %v984
        %993 = vrot.lane.b32.xlu0 %v541, 32
        %v994 = vpop.permute.xlu0 %993
        %995 = vrot.lane.b32.xlu0 %v543, 32
        %v996 = vpop.permute.xlu0 %995
        %997 = vrot.lane.b32.xlu0 %v612, 32
        %v998 = vpop.permute.xlu0 %997
        %999 = vrot.lane.b32.xlu0 %v614, 32
        %v1000 = vpop.permute.xlu0 %999
        %1001 = vrot.lane.b32.xlu0 %v683, 32
        %v1002 = vpop.permute.xlu0 %1001
        %1003 = vrot.lane.b32.xlu0 %v685, 32
        %v1004 = vpop.permute.xlu0 %1003
        %1005 = vrot.lane.b32.xlu0 %v754, 32
        %v1006 = vpop.permute.xlu0 %1005
        %1007 = vrot.lane.b32.xlu0 %v756, 32
        %v1008 = vpop.permute.xlu0 %1007
        %v1009 = vsel %vm945, %v1006, %v1008
        %v1010 = vsel %vm945, %v1004, %v1006
        %v1011 = vsel %vm945, %v1002, %v1004
        %v1012 = vsel %vm945, %v1000, %v1002
        %v1013 = vsel %vm945, %v998, %v1000
        %v1014 = vsel %vm945, %v996, %v998
        %v1015 = vsel %vm945, %v994, %v996
        %v1016 = vsel %vm945, %v1008, %v994
        %v1017 = vsel %vm945, 0.0, %v1016
        %v1018 = vsel %vm946, 0.0, %v1015
        %v1019 = vsel %vm947, 0.0, %v1014
        %v1020 = vsel %vm948, 0.0, %v1013
        %v1021 = vsel %vm949, 0.0, %v1012
        %v1022 = vsel %vm950, 0.0, %v1011
        %v1023 = vsel %vm951, 0.0, %v1010
        %v1024 = vsel %vm952, 0.0, %v1009
        %v1033 = vrot.slane %v1017, 4
        %v1034 = vrot.slane %v1018, 4
        %v1035 = vrot.slane %v1019, 4
        %v1036 = vrot.slane %v1020, 4
        %v1037 = vrot.slane %v1021, 4
        %v1038 = vrot.slane %v1022, 4
        %v1039 = vrot.slane %v1023, 4
        %v1040 = vrot.slane %v1024, 4
        %1049 = vst [vmem:[#allocation2] sm:$0xf0] %v1033
        %1050 = vst [vmem:[#allocation2 + $0x8] sm:$0xf0] %v1034
        %1051 = vst [vmem:[#allocation2 + $0x10] sm:$0xf0] %v1035
        %1052 = vst [vmem:[#allocation2 + $0x18] sm:$0xf0] %v1036
        %1053 = vst [vmem:[#allocation2 + $0x20] sm:$0xf0] %v1037
        %1054 = vst [vmem:[#allocation2 + $0x28] sm:$0xf0] %v1038
        %1055 = vst [vmem:[#allocation2 + $0x30] sm:$0xf0] %v1039
        %1056 = vst [vmem:[#allocation2 + $0x38] sm:$0xf0] %v1040
        %1057 = vrot.lane.b32.xlu0 %v937, 32
        %v1058 = vpop.permute.xlu0 %1057
        %1059 = vrot.lane.b32.xlu0 %v938, 32
        %v1060 = vpop.permute.xlu0 %1059
        %1061 = vrot.lane.b32.xlu0 %v939, 32
        %v1062 = vpop.permute.xlu0 %1061
        %1063 = vrot.lane.b32.xlu0 %v940, 32
        %v1064 = vpop.permute.xlu0 %1063
        %1065 = vrot.lane.b32.xlu0 %v941, 32
        %v1066 = vpop.permute.xlu0 %1065
        %1067 = vrot.lane.b32.xlu0 %v942, 32
        %v1068 = vpop.permute.xlu0 %1067
        %1069 = vrot.lane.b32.xlu0 %v943, 32
        %v1070 = vpop.permute.xlu0 %1069
        %1071 = vrot.lane.b32.xlu0 %v944, 32
        %v1072 = vpop.permute.xlu0 %1071
        %v1073 = vsel %vm945, %v1070, %v1072
        %v1074 = vsel %vm945, %v1068, %v1070
        %v1075 = vsel %vm945, %v1066, %v1068
        %v1076 = vsel %vm945, %v1064, %v1066
        %v1077 = vsel %vm945, %v1062, %v1064
        %v1078 = vsel %vm945, %v1060, %v1062
        %v1079 = vsel %vm945, %v1058, %v1060
        %v1080 = vsel %vm945, %v1072, %v1058
        %v1081 = vsel %vm945, 0.0, %v1080
        %v1082 = vsel %vm946, 0.0, %v1079
        %v1083 = vsel %vm947, 0.0, %v1078
        %v1084 = vsel %vm948, 0.0, %v1077
        %v1085 = vsel %vm949, 0.0, %v1076
        %v1086 = vsel %vm950, 0.0, %v1075
        %v1087 = vsel %vm951, 0.0, %v1074
        %v1088 = vsel %vm952, 0.0, %v1073
        %1089 = vst [vmem:[#allocation2 + $0x40] sm:$0xf] %v1081
        %1090 = vst [vmem:[#allocation2 + $0x48] sm:$0xf] %v1082
        %1091 = vst [vmem:[#allocation2 + $0x50] sm:$0xf] %v1083
        %1092 = vst [vmem:[#allocation2 + $0x58] sm:$0xf] %v1084
        %1093 = vst [vmem:[#allocation2 + $0x60] sm:$0xf] %v1085
        %1094 = vst [vmem:[#allocation2 + $0x68] sm:$0xf] %v1086
        %1095 = vst [vmem:[#allocation2 + $0x70] sm:$0xf] %v1087
        %1096 = vst [vmem:[#allocation2 + $0x78] sm:$0xf] %v1088
        %v1105 = vrot.slane %v896, 4
        %v1106 = vrot.slane %v897, 4
        %v1107 = vrot.slane %v898, 4
        %v1108 = vrot.slane %v899, 4
        %v1109 = vrot.slane %v900, 4
        %v1110 = vrot.slane %v901, 4
        %v1111 = vrot.slane %v902, 4
        %v1112 = vrot.slane %v903, 4
        %1121 = vst [vmem:[#allocation2 + $0x40] sm:$0xf0] %v1105
        %1122 = vst [vmem:[#allocation2 + $0x48] sm:$0xf0] %v1106
        %1123 = vst [vmem:[#allocation2 + $0x50] sm:$0xf0] %v1107
        %1124 = vst [vmem:[#allocation2 + $0x58] sm:$0xf0] %v1108
        %1125 = vst [vmem:[#allocation2 + $0x60] sm:$0xf0] %v1109
        %1126 = vst [vmem:[#allocation2 + $0x68] sm:$0xf0] %v1110
        %1127 = vst [vmem:[#allocation2 + $0x70] sm:$0xf0] %v1111
        %1128 = vst [vmem:[#allocation2 + $0x78] sm:$0xf0] %v1112
        %1129 = vst [vmem:[#allocation2 + $0x80] sm:$0xf] %v541
        %1130 = vst [vmem:[#allocation2 + $0x88] sm:$0xf] %v543
        %1131 = vst [vmem:[#allocation2 + $0x90] sm:$0xf] %v612
        %1132 = vst [vmem:[#allocation2 + $0x98] sm:$0xf] %v614
        %1133 = vst [vmem:[#allocation2 + $0xa0] sm:$0xf] %v683
        %1134 = vst [vmem:[#allocation2 + $0xa8] sm:$0xf] %v685
        %1135 = vst [vmem:[#allocation2 + $0xb0] sm:$0xf] %v754
        %1136 = vst [vmem:[#allocation2 + $0xb8] sm:$0xf] %v756
        %v1145 = vrot.slane %v937, 4
        %v1146 = vrot.slane %v938, 4
        %v1147 = vrot.slane %v939, 4
        %v1148 = vrot.slane %v940, 4
        %v1149 = vrot.slane %v941, 4
        %v1150 = vrot.slane %v942, 4
        %v1151 = vrot.slane %v943, 4
        %v1152 = vrot.slane %v944, 4
        %1161 = vst [vmem:[#allocation2 + $0x80] sm:$0xf0] %v1145
        %1162 = vst [vmem:[#allocation2 + $0x88] sm:$0xf0] %v1146
        %1163 = vst [vmem:[#allocation2 + $0x90] sm:$0xf0] %v1147
        %1164 = vst [vmem:[#allocation2 + $0x98] sm:$0xf0] %v1148
        %1165 = vst [vmem:[#allocation2 + $0xa0] sm:$0xf0] %v1149
        %1166 = vst [vmem:[#allocation2 + $0xa8] sm:$0xf0] %v1150
        %1167 = vst [vmem:[#allocation2 + $0xb0] sm:$0xf0] %v1151
        %1168 = vst [vmem:[#allocation2 + $0xb8] sm:$0xf0] %v1152
        %vm1169 = vcmp.ge.s32.totalorder %v759, 992
        %vm1170 = vcmp.ge.s32.totalorder %v760, 992
        %vm1171 = vcmp.ge.s32.totalorder %v761, 992
        %vm1172 = vcmp.ge.s32.totalorder %v762, 992
        %vm1173 = vcmp.ge.s32.totalorder %v763, 992
        %vm1174 = vcmp.ge.s32.totalorder %v764, 992
        %vm1175 = vcmp.ge.s32.totalorder %v765, 992
        %vm1176 = vcmp.ge.s32.totalorder %v766, 992
        %1177 = vrot.lane.b32.xlu0 %v896, 96
        %v1178 = vpop.permute.xlu0 %1177
        %1179 = vrot.lane.b32.xlu0 %v897, 96
        %v1180 = vpop.permute.xlu0 %1179
        %1181 = vrot.lane.b32.xlu0 %v898, 96
        %v1182 = vpop.permute.xlu0 %1181
        %1183 = vrot.lane.b32.xlu0 %v899, 96
        %v1184 = vpop.permute.xlu0 %1183
        %1185 = vrot.lane.b32.xlu0 %v900, 96
        %v1186 = vpop.permute.xlu0 %1185
        %1187 = vrot.lane.b32.xlu0 %v901, 96
        %v1188 = vpop.permute.xlu0 %1187
        %1189 = vrot.lane.b32.xlu0 %v902, 96
        %v1190 = vpop.permute.xlu0 %1189
        %1191 = vrot.lane.b32.xlu0 %v903, 96
        %v1192 = vpop.permute.xlu0 %1191
        %vm1193 = vcmp.lt.s32.totalorder %v759, 96
        %v1194 = vsel %vm1193, %v1190, %v1192
        %v1195 = vsel %vm1193, %v1188, %v1190
        %v1196 = vsel %vm1193, %v1186, %v1188
        %v1197 = vsel %vm1193, %v1184, %v1186
        %v1198 = vsel %vm1193, %v1182, %v1184
        %v1199 = vsel %vm1193, %v1180, %v1182
        %v1200 = vsel %vm1193, %v1178, %v1180
        %v1201 = vsel %vm1193, %v1192, %v1178
        %v1202 = vsel %vm1169, 0.0, %v1200
        %v1203 = vsel %vm1170, 0.0, %v1199
        %v1204 = vsel %vm1171, 0.0, %v1198
        %v1205 = vsel %vm1172, 0.0, %v1197
        %v1206 = vsel %vm1173, 0.0, %v1196
        %v1207 = vsel %vm1174, 0.0, %v1195
        %v1208 = vsel %vm1175, 0.0, %v1194
        %v1209 = vsel %vm1176, 0.0, %v1201
        %1210 = vst [vmem:[#allocation2 + $0xc0] sm:$0xf] %v1202
        %1211 = vst [vmem:[#allocation2 + $0xc8] sm:$0xf] %v1203
        %1212 = vst [vmem:[#allocation2 + $0xd0] sm:$0xf] %v1204
        %1213 = vst [vmem:[#allocation2 + $0xd8] sm:$0xf] %v1205
        %1214 = vst [vmem:[#allocation2 + $0xe0] sm:$0xf] %v1206
        %1215 = vst [vmem:[#allocation2 + $0xe8] sm:$0xf] %v1207
        %1216 = vst [vmem:[#allocation2 + $0xf0] sm:$0xf] %v1208
        %1217 = vst [vmem:[#allocation2 + $0xf8] sm:$0xf] %v1209
        %1218 = vrot.lane.b32.xlu0 %v541, 96
        %v1219 = vpop.permute.xlu0 %1218
        %1220 = vrot.lane.b32.xlu0 %v543, 96
        %v1221 = vpop.permute.xlu0 %1220
        %1222 = vrot.lane.b32.xlu0 %v612, 96
        %v1223 = vpop.permute.xlu0 %1222
        %1224 = vrot.lane.b32.xlu0 %v614, 96
        %v1225 = vpop.permute.xlu0 %1224
        %1226 = vrot.lane.b32.xlu0 %v683, 96
        %v1227 = vpop.permute.xlu0 %1226
        %1228 = vrot.lane.b32.xlu0 %v685, 96
        %v1229 = vpop.permute.xlu0 %1228
        %1230 = vrot.lane.b32.xlu0 %v754, 96
        %v1231 = vpop.permute.xlu0 %1230
        %1232 = vrot.lane.b32.xlu0 %v756, 96
        %v1233 = vpop.permute.xlu0 %1232
        %v1234 = vsel %vm1193, %v1231, %v1233
        %v1235 = vsel %vm1193, %v1229, %v1231
        %v1236 = vsel %vm1193, %v1227, %v1229
        %v1237 = vsel %vm1193, %v1225, %v1227
        %v1238 = vsel %vm1193, %v1223, %v1225
        %v1239 = vsel %vm1193, %v1221, %v1223
        %v1240 = vsel %vm1193, %v1219, %v1221
        %v1241 = vsel %vm1193, %v1233, %v1219
        %v1242 = vsel %vm1169, 0.0, %v1240
        %v1243 = vsel %vm1170, 0.0, %v1239
        %v1244 = vsel %vm1171, 0.0, %v1238
        %v1245 = vsel %vm1172, 0.0, %v1237
        %v1246 = vsel %vm1173, 0.0, %v1236
        %v1247 = vsel %vm1174, 0.0, %v1235
        %v1248 = vsel %vm1175, 0.0, %v1234
        %v1249 = vsel %vm1176, 0.0, %v1241
        %v1258 = vrot.slane %v1242, 4
        %v1259 = vrot.slane %v1243, 4
        %v1260 = vrot.slane %v1244, 4
        %v1261 = vrot.slane %v1245, 4
        %v1262 = vrot.slane %v1246, 4
        %v1263 = vrot.slane %v1247, 4
        %v1264 = vrot.slane %v1248, 4
        %v1265 = vrot.slane %v1249, 4
        %1274 = vst [vmem:[#allocation2 + $0xc0] sm:$0xf0] %v1258
        %1275 = vst [vmem:[#allocation2 + $0xc8] sm:$0xf0] %v1259
        %1276 = vst [vmem:[#allocation2 + $0xd0] sm:$0xf0] %v1260
        %1277 = vst [vmem:[#allocation2 + $0xd8] sm:$0xf0] %v1261
        %1278 = vst [vmem:[#allocation2 + $0xe0] sm:$0xf0] %v1262
        %1279 = vst [vmem:[#allocation2 + $0xe8] sm:$0xf0] %v1263
        %1280 = vst [vmem:[#allocation2 + $0xf0] sm:$0xf0] %v1264
        %1281 = vst [vmem:[#allocation2 + $0xf8] sm:$0xf0] %v1265
        %1282 = vrot.lane.b32.xlu0 %v937, 96
        %v1283 = vpop.permute.xlu0 %1282
        %1284 = vrot.lane.b32.xlu0 %v938, 96
        %v1285 = vpop.permute.xlu0 %1284
        %1286 = vrot.lane.b32.xlu0 %v939, 96
        %v1287 = vpop.permute.xlu0 %1286
        %1288 = vrot.lane.b32.xlu0 %v940, 96
        %v1289 = vpop.permute.xlu0 %1288
        %1290 = vrot.lane.b32.xlu0 %v941, 96
        %v1291 = vpop.permute.xlu0 %1290
        %1292 = vrot.lane.b32.xlu0 %v942, 96
        %v1293 = vpop.permute.xlu0 %1292
        %1294 = vrot.lane.b32.xlu0 %v943, 96
        %v1295 = vpop.permute.xlu0 %1294
        %1296 = vrot.lane.b32.xlu0 %v944, 96
        %v1297 = vpop.permute.xlu0 %1296
        %v1298 = vsel %vm1193, %v1295, %v1297
        %v1299 = vsel %vm1193, %v1293, %v1295
        %v1300 = vsel %vm1193, %v1291, %v1293
        %v1301 = vsel %vm1193, %v1289, %v1291
        %v1302 = vsel %vm1193, %v1287, %v1289
        %v1303 = vsel %vm1193, %v1285, %v1287
        %v1304 = vsel %vm1193, %v1283, %v1285
        %v1305 = vsel %vm1193, %v1297, %v1283
        %v1306 = vsel %vm1169, 0.0, %v1304
        %v1307 = vsel %vm1170, 0.0, %v1303
        %v1308 = vsel %vm1171, 0.0, %v1302
        %v1309 = vsel %vm1172, 0.0, %v1301
        %v1310 = vsel %vm1173, 0.0, %v1300
        %v1311 = vsel %vm1174, 0.0, %v1299
        %v1312 = vsel %vm1175, 0.0, %v1298
        %v1313 = vsel %vm1176, 0.0, %v1305
        %1314 = vst [vmem:[#allocation2 + $0x100] sm:$0xf] %v1306
        %1315 = vst [vmem:[#allocation2 + $0x108] sm:$0xf] %v1307
        %1316 = vst [vmem:[#allocation2 + $0x110] sm:$0xf] %v1308
        %1317 = vst [vmem:[#allocation2 + $0x118] sm:$0xf] %v1309
        %1318 = vst [vmem:[#allocation2 + $0x120] sm:$0xf] %v1310
        %1319 = vst [vmem:[#allocation2 + $0x128] sm:$0xf] %v1311
        %1320 = vst [vmem:[#allocation2 + $0x130] sm:$0xf] %v1312
        %1321 = vst [vmem:[#allocation2 + $0x138] sm:$0xf] %v1313
        %s1322 = scalar_lea.vmem [#allocation2], 260
        %1323 = vst [vmem:[%s1322] ss:$8 sm:$0xf] 1.0
        %1324 = vst [vmem:[%s1322] ss:$8 sm:$0xf0] 1.0
        %1325 = vst [vmem:[#allocation2 + $0x100] sm:$0xe0] 0.0
        %1326 = vst [vmem:[#allocation2 + $0x108] sm:$0xe0] 0.0
        %1327 = vst [vmem:[#allocation2 + $0x110] sm:$0xe0] 0.0
        %1328 = vst [vmem:[#allocation2 + $0x118] sm:$0xe0] 0.0
        %1329 = vst [vmem:[#allocation2 + $0x120] sm:$0xe0] 0.0
        %1330 = vst [vmem:[#allocation2 + $0x128] sm:$0xe0] 0.0
        %1331 = vst [vmem:[#allocation2 + $0x130] sm:$0xe0] 0.0
        %1332 = vst [vmem:[#allocation2 + $0x138] sm:$0xe0] 0.0
        %v1333 = vld [vmem:[#allocation8] sm:$0xff]
        %v1334 = vld [vmem:[#allocation2] sm:$0xff]
        %v1335 = vld [vmem:[#allocation2 + $0x8] sm:$0xff]
        %v1336 = vld [vmem:[#allocation2 + $0x10] sm:$0xff]
        %v1337 = vld [vmem:[#allocation2 + $0x18] sm:$0xff]
        %v1338 = vld [vmem:[#allocation2 + $0x20] sm:$0xff]
        %v1339 = vld [vmem:[#allocation2 + $0x28] sm:$0xff]
        %v1340 = vld [vmem:[#allocation2 + $0x30] sm:$0xff]
        %v1341 = vld [vmem:[#allocation2 + $0x38] sm:$0xff]
        %v1342 = vld [vmem:[#allocation2 + $0x40] sm:$0xff]
        %v1343 = vld [vmem:[#allocation2 + $0x48] sm:$0xff]
        %v1344 = vld [vmem:[#allocation2 + $0x50] sm:$0xff]
        %v1345 = vld [vmem:[#allocation2 + $0x58] sm:$0xff]
        %v1346 = vld [vmem:[#allocation2 + $0x60] sm:$0xff]
        %v1347 = vld [vmem:[#allocation2 + $0x68] sm:$0xff]
        %v1348 = vld [vmem:[#allocation2 + $0x70] sm:$0xff]
        %v1349 = vld [vmem:[#allocation2 + $0x78] sm:$0xff]
        %v1350 = vld [vmem:[#allocation2 + $0x80] sm:$0xff]
        %v1351 = vld [vmem:[#allocation2 + $0x88] sm:$0xff]
        %v1352 = vld [vmem:[#allocation2 + $0x90] sm:$0xff]
        %v1353 = vld [vmem:[#allocation2 + $0x98] sm:$0xff]
        %v1354 = vld [vmem:[#allocation2 + $0xa0] sm:$0xff]
        %v1355 = vld [vmem:[#allocation2 + $0xa8] sm:$0xff]
        %v1356 = vld [vmem:[#allocation2 + $0xb0] sm:$0xff]
        %v1357 = vld [vmem:[#allocation2 + $0xb8] sm:$0xff]
        %v1358 = vld [vmem:[#allocation2 + $0xc0] sm:$0xff]
        %v1359 = vld [vmem:[#allocation2 + $0xc8] sm:$0xff]
        %v1360 = vld [vmem:[#allocation2 + $0xd0] sm:$0xff]
        %v1361 = vld [vmem:[#allocation2 + $0xd8] sm:$0xff]
        %v1362 = vld [vmem:[#allocation2 + $0xe0] sm:$0xff]
        %v1363 = vld [vmem:[#allocation2 + $0xe8] sm:$0xff]
        %v1364 = vld [vmem:[#allocation2 + $0xf0] sm:$0xff]
        %v1365 = vld [vmem:[#allocation2 + $0xf8] sm:$0xff]
        %v1366 = vld [vmem:[#allocation2 + $0x100] sm:$0xff]
        %v1367 = vld [vmem:[#allocation2 + $0x108] sm:$0xff]
        %v1368 = vld [vmem:[#allocation2 + $0x110] sm:$0xff]
        %v1369 = vld [vmem:[#allocation2 + $0x118] sm:$0xff]
        %v1370 = vld [vmem:[#allocation2 + $0x120] sm:$0xff]
        %v1371 = vld [vmem:[#allocation2 + $0x128] sm:$0xff]
        %v1372 = vld [vmem:[#allocation2 + $0x130] sm:$0xff]
        %v1373 = vld [vmem:[#allocation2 + $0x138] sm:$0xff]
        %vm1374 = vcmask 326656
        %v1376 = vsel %vm1374, %v1333, 0
        %1378 = vmatprep.subr.mxu0 %v1335
        %1379 = vmatpush1.msra.mxu0 %v1334
        %1380 = vmatprep.subr.mxu0 %v1343
        %1381 = vmatpush1.msra.mxu0 %v1342
        %1382 = vmatprep.subr.mxu0 %v1351
        %1383 = vmatpush1.msra.mxu0 %v1350
        %1384 = vmatprep.subr.mxu0 %v1359
        %1385 = vmatpush1.msra.mxu0 %v1358
        %1386 = vmatprep.subr.mxu0 %v1367
        %1387 = vmatpush1.msra.mxu0 %v1366
        %1388 = vmatprep.subr.mxu0 0.0
        %1389 = vmatpush1.msra.mxu0 0.0
        %1390 = vmatprep.subr.mxu0 0.0
        %1391 = vmatpush1.msra.mxu0 0.0
        %1392 = vmatprep.subr.mxu0 0.0
        %1393 = vmatpush1.msra.mxu0 0.0
        %1394 = vmatprep.subr.mxu0 0.0
        %1395 = vmatpush1.msra.mxu0 0.0
        %1396 = vmatprep.subr.mxu0 0.0
        %1397 = vmatpush1.msra.mxu0 0.0
        %1398 = vmatprep.subr.mxu0 0.0
        %1399 = vmatpush1.msra.mxu0 0.0
        %1400 = vmatprep.subr.mxu0 0.0
        %1401 = vmatpush1.msra.mxu0 0.0
        %1402 = vmatprep.subr.mxu0 0.0
        %1403 = vmatpush1.msra.mxu0 0.0
        %1404 = vmatprep.subr.mxu0 0.0
        %1405 = vmatpush1.msra.mxu0 0.0
        %1406 = vmatprep.subr.mxu0 0.0
        %1407 = vmatpush1.msra.mxu0 0.0
        %1408 = vmatprep.subr.mxu0 0.0
        %1409 = vmatpush1.msra.mxu0 0.0
        %1410 = vmatprep.subr.mxu0 0.0
        %1411 = vmatpush1.msra.mxu0 0.0
        %1412 = vmatprep.subr.mxu0 0.0
        %1413 = vmatpush1.msra.mxu0 0.0
        %1414 = vmatprep.subr.mxu0 0.0
        %1415 = vmatpush1.msra.mxu0 0.0
        %1416 = vmatprep.subr.mxu0 0.0
        %1417 = vmatpush1.msra.mxu0 0.0
        %1418 = vmatprep.subr.mxu0 0.0
        %1419 = vmatpush1.msra.mxu0 0.0
        %1420 = vmatprep.subr.mxu0 0.0
        %1421 = vmatpush1.msra.mxu0 0.0
        %1422 = vmatprep.subr.mxu0 0.0
        %1423 = vmatpush1.msra.mxu0 0.0
        %1424 = vmatprep.subr.mxu0 0.0
        %1425 = vmatpush1.msra.mxu0 0.0
        %1426 = vmatprep.subr.mxu0 0.0
        %1427 = vmatpush1.msra.mxu0 0.0
        %1428 = vmatprep.subr.mxu0 0.0
        %1429 = vmatpush1.msra.mxu0 0.0
        %1430 = vmatprep.subr.mxu0 0.0
        %1431 = vmatpush1.msra.mxu0 0.0
        %1432 = vmatprep.subr.mxu0 0.0
        %1433 = vmatpush1.msra.mxu0 0.0
        %1434 = vmatprep.subr.mxu0 0.0
        %1435 = vmatpush1.msra.mxu0 0.0
        %1436 = vmatprep.subr.mxu0 0.0
        %1437 = vmatpush1.msra.mxu0 0.0
        %1438 = vmatprep.subr.mxu0 0.0
        %1439 = vmatpush1.msra.mxu0 0.0
        %1440 = vmatprep.subr.mxu0 0.0
        %1441 = vmatpush1.msra.mxu0 0.0
        %1442 = vmatprep.mubr.f32.mxu0 0.0
        %1443 = vmatmul.mubr.f32.gmra.mrb[0].mxu0 %v1376
        %v1444 = vpop.f32.mrb[0].mxu0
        %v1445 = vadd.f32 0.0, %v1444
        %v1446 = vpop.f32.mrb[0].mxu0
        %v1447 = vadd.f32 0.0, %v1446
        %1448 = vdwg.mxu0
        %1449 = vmatprep.subr.mxu0 %v1337
        %1450 = vmatpush1.msra.mxu0 %v1336
        %1451 = vmatprep.subr.mxu0 %v1345
        %1452 = vmatpush1.msra.mxu0 %v1344
        %1453 = vmatprep.subr.mxu0 %v1353
        %1454 = vmatpush1.msra.mxu0 %v1352
        %1455 = vmatprep.subr.mxu0 %v1361
        %1456 = vmatpush1.msra.mxu0 %v1360
        %1457 = vmatprep.subr.mxu0 %v1369
        %1458 = vmatpush1.msra.mxu0 %v1368
        %1459 = vmatprep.subr.mxu0 0.0
        %1460 = vmatpush1.msra.mxu0 0.0
        %1461 = vmatprep.subr.mxu0 0.0
        %1462 = vmatpush1.msra.mxu0 0.0
        %1463 = vmatprep.subr.mxu0 0.0
        %1464 = vmatpush1.msra.mxu0 0.0
        %1465 = vmatprep.subr.mxu0 0.0
        %1466 = vmatpush1.msra.mxu0 0.0
        %1467 = vmatprep.subr.mxu0 0.0
        %1468 = vmatpush1.msra.mxu0 0.0
        %1469 = vmatprep.subr.mxu0 0.0
        %1470 = vmatpush1.msra.mxu0 0.0
        %1471 = vmatprep.subr.mxu0 0.0
        %1472 = vmatpush1.msra.mxu0 0.0
        %1473 = vmatprep.subr.mxu0 0.0
        %1474 = vmatpush1.msra.mxu0 0.0
        %1475 = vmatprep.subr.mxu0 0.0
        %1476 = vmatpush1.msra.mxu0 0.0
        %1477 = vmatprep.subr.mxu0 0.0
        %1478 = vmatpush1.msra.mxu0 0.0
        %1479 = vmatprep.subr.mxu0 0.0
        %1480 = vmatpush1.msra.mxu0 0.0
        %1481 = vmatprep.subr.mxu0 0.0
        %1482 = vmatpush1.msra.mxu0 0.0
        %1483 = vmatprep.subr.mxu0 0.0
        %1484 = vmatpush1.msra.mxu0 0.0
        %1485 = vmatprep.subr.mxu0 0.0
        %1486 = vmatpush1.msra.mxu0 0.0
        %1487 = vmatprep.subr.mxu0 0.0
        %1488 = vmatpush1.msra.mxu0 0.0
        %1489 = vmatprep.subr.mxu0 0.0
        %1490 = vmatpush1.msra.mxu0 0.0
        %1491 = vmatprep.subr.mxu0 0.0
        %1492 = vmatpush1.msra.mxu0 0.0
        %1493 = vmatprep.subr.mxu0 0.0
        %1494 = vmatpush1.msra.mxu0 0.0
        %1495 = vmatprep.subr.mxu0 0.0
        %1496 = vmatpush1.msra.mxu0 0.0
        %1497 = vmatprep.subr.mxu0 0.0
        %1498 = vmatpush1.msra.mxu0 0.0
        %1499 = vmatprep.subr.mxu0 0.0
        %1500 = vmatpush1.msra.mxu0 0.0
        %1501 = vmatprep.subr.mxu0 0.0
        %1502 = vmatpush1.msra.mxu0 0.0
        %1503 = vmatprep.subr.mxu0 0.0
        %1504 = vmatpush1.msra.mxu0 0.0
        %1505 = vmatprep.subr.mxu0 0.0
        %1506 = vmatpush1.msra.mxu0 0.0
        %1507 = vmatprep.subr.mxu0 0.0
        %1508 = vmatpush1.msra.mxu0 0.0
        %1509 = vmatprep.subr.mxu0 0.0
        %1510 = vmatpush1.msra.mxu0 0.0
        %1511 = vmatprep.subr.mxu0 0.0
        %1512 = vmatpush1.msra.mxu0 0.0
        %1513 = vmatprep.mubr.f32.mxu0 0.0
        %1514 = vmatmul.mubr.f32.gmra.mrb[0].mxu0 %v1376
        %v1515 = vpop.f32.mrb[0].mxu0
        %v1516 = vadd.f32 0.0, %v1515
        %v1517 = vpop.f32.mrb[0].mxu0
        %v1518 = vadd.f32 0.0, %v1517
        %1519 = vdwg.mxu0
        %1520 = vmatprep.subr.mxu0 %v1339
        %1521 = vmatpush1.msra.mxu0 %v1338
        %1522 = vmatprep.subr.mxu0 %v1347
        %1523 = vmatpush1.msra.mxu0 %v1346
        %1524 = vmatprep.subr.mxu0 %v1355
        %1525 = vmatpush1.msra.mxu0 %v1354
        %1526 = vmatprep.subr.mxu0 %v1363
        %1527 = vmatpush1.msra.mxu0 %v1362
        %1528 = vmatprep.subr.mxu0 %v1371
        %1529 = vmatpush1.msra.mxu0 %v1370
        %1530 = vmatprep.subr.mxu0 0.0
        %1531 = vmatpush1.msra.mxu0 0.0
        %1532 = vmatprep.subr.mxu0 0.0
        %1533 = vmatpush1.msra.mxu0 0.0
        %1534 = vmatprep.subr.mxu0 0.0
        %1535 = vmatpush1.msra.mxu0 0.0
        %1536 = vmatprep.subr.mxu0 0.0
        %1537 = vmatpush1.msra.mxu0 0.0
        %1538 = vmatprep.subr.mxu0 0.0
        %1539 = vmatpush1.msra.mxu0 0.0
        %1540 = vmatprep.subr.mxu0 0.0
        %1541 = vmatpush1.msra.mxu0 0.0
        %1542 = vmatprep.subr.mxu0 0.0
        %1543 = vmatpush1.msra.mxu0 0.0
        %1544 = vmatprep.subr.mxu0 0.0
        %1545 = vmatpush1.msra.mxu0 0.0
        %1546 = vmatprep.subr.mxu0 0.0
        %1547 = vmatpush1.msra.mxu0 0.0
        %1548 = vmatprep.subr.mxu0 0.0
        %1549 = vmatpush1.msra.mxu0 0.0
        %1550 = vmatprep.subr.mxu0 0.0
        %1551 = vmatpush1.msra.mxu0 0.0
        %1552 = vmatprep.subr.mxu0 0.0
        %1553 = vmatpush1.msra.mxu0 0.0
        %1554 = vmatprep.subr.mxu0 0.0
        %1555 = vmatpush1.msra.mxu0 0.0
        %1556 = vmatprep.subr.mxu0 0.0
        %1557 = vmatpush1.msra.mxu0 0.0
        %1558 = vmatprep.subr.mxu0 0.0
        %1559 = vmatpush1.msra.mxu0 0.0
        %1560 = vmatprep.subr.mxu0 0.0
        %1561 = vmatpush1.msra.mxu0 0.0
        %1562 = vmatprep.subr.mxu0 0.0
        %1563 = vmatpush1.msra.mxu0 0.0
        %1564 = vmatprep.subr.mxu0 0.0
        %1565 = vmatpush1.msra.mxu0 0.0
        %1566 = vmatprep.subr.mxu0 0.0
        %1567 = vmatpush1.msra.mxu0 0.0
        %1568 = vmatprep.subr.mxu0 0.0
        %1569 = vmatpush1.msra.mxu0 0.0
        %1570 = vmatprep.subr.mxu0 0.0
        %1571 = vmatpush1.msra.mxu0 0.0
        %1572 = vmatprep.subr.mxu0 0.0
        %1573 = vmatpush1.msra.mxu0 0.0
        %1574 = vmatprep.subr.mxu0 0.0
        %1575 = vmatpush1.msra.mxu0 0.0
        %1576 = vmatprep.subr.mxu0 0.0
        %1577 = vmatpush1.msra.mxu0 0.0
        %1578 = vmatprep.subr.mxu0 0.0
        %1579 = vmatpush1.msra.mxu0 0.0
        %1580 = vmatprep.subr.mxu0 0.0
        %1581 = vmatpush1.msra.mxu0 0.0
        %1582 = vmatprep.subr.mxu0 0.0
        %1583 = vmatpush1.msra.mxu0 0.0
        %1584 = vmatprep.mubr.f32.mxu0 0.0
        %1585 = vmatmul.mubr.f32.gmra.mrb[0].mxu0 %v1376
        %v1586 = vpop.f32.mrb[0].mxu0
        %v1587 = vadd.f32 0.0, %v1586
        %v1588 = vpop.f32.mrb[0].mxu0
        %v1589 = vadd.f32 0.0, %v1588
        %1590 = vdwg.mxu0
        %1591 = vmatprep.subr.mxu0 %v1341
        %1592 = vmatpush1.msra.mxu0 %v1340
        %1593 = vmatprep.subr.mxu0 %v1349
        %1594 = vmatpush1.msra.mxu0 %v1348
        %1595 = vmatprep.subr.mxu0 %v1357
        %1596 = vmatpush1.msra.mxu0 %v1356
        %1597 = vmatprep.subr.mxu0 %v1365
        %1598 = vmatpush1.msra.mxu0 %v1364
        %1599 = vmatprep.subr.mxu0 %v1373
        %1600 = vmatpush1.msra.mxu0 %v1372
        %1601 = vmatprep.subr.mxu0 0.0
        %1602 = vmatpush1.msra.mxu0 0.0
        %1603 = vmatprep.subr.mxu0 0.0
        %1604 = vmatpush1.msra.mxu0 0.0
        %1605 = vmatprep.subr.mxu0 0.0
        %1606 = vmatpush1.msra.mxu0 0.0
        %1607 = vmatprep.subr.mxu0 0.0
        %1608 = vmatpush1.msra.mxu0 0.0
        %1609 = vmatprep.subr.mxu0 0.0
        %1610 = vmatpush1.msra.mxu0 0.0
        %1611 = vmatprep.subr.mxu0 0.0
        %1612 = vmatpush1.msra.mxu0 0.0
        %1613 = vmatprep.subr.mxu0 0.0
        %1614 = vmatpush1.msra.mxu0 0.0
        %1615 = vmatprep.subr.mxu0 0.0
        %1616 = vmatpush1.msra.mxu0 0.0
        %1617 = vmatprep.subr.mxu0 0.0
        %1618 = vmatpush1.msra.mxu0 0.0
        %1619 = vmatprep.subr.mxu0 0.0
        %1620 = vmatpush1.msra.mxu0 0.0
        %1621 = vmatprep.subr.mxu0 0.0
        %1622 = vmatpush1.msra.mxu0 0.0
        %1623 = vmatprep.subr.mxu0 0.0
        %1624 = vmatpush1.msra.mxu0 0.0
        %1625 = vmatprep.subr.mxu0 0.0
        %1626 = vmatpush1.msra.mxu0 0.0
        %1627 = vmatprep.subr.mxu0 0.0
        %1628 = vmatpush1.msra.mxu0 0.0
        %1629 = vmatprep.subr.mxu0 0.0
        %1630 = vmatpush1.msra.mxu0 0.0
        %1631 = vmatprep.subr.mxu0 0.0
        %1632 = vmatpush1.msra.mxu0 0.0
        %1633 = vmatprep.subr.mxu0 0.0
        %1634 = vmatpush1.msra.mxu0 0.0
        %1635 = vmatprep.subr.mxu0 0.0
        %1636 = vmatpush1.msra.mxu0 0.0
        %1637 = vmatprep.subr.mxu0 0.0
        %1638 = vmatpush1.msra.mxu0 0.0
        %1639 = vmatprep.subr.mxu0 0.0
        %1640 = vmatpush1.msra.mxu0 0.0
        %1641 = vmatprep.subr.mxu0 0.0
        %1642 = vmatpush1.msra.mxu0 0.0
        %1643 = vmatprep.subr.mxu0 0.0
        %1644 = vmatpush1.msra.mxu0 0.0
        %1645 = vmatprep.subr.mxu0 0.0
        %1646 = vmatpush1.msra.mxu0 0.0
        %1647 = vmatprep.subr.mxu0 0.0
        %1648 = vmatpush1.msra.mxu0 0.0
        %1649 = vmatprep.subr.mxu0 0.0
        %1650 = vmatpush1.msra.mxu0 0.0
        %1651 = vmatprep.subr.mxu0 0.0
        %1652 = vmatpush1.msra.mxu0 0.0
        %1653 = vmatprep.subr.mxu0 0.0
        %1654 = vmatpush1.msra.mxu0 0.0
        %1655 = vmatprep.mubr.f32.mxu0 0.0
        %1656 = vmatmul.mubr.f32.gmra.mrb[0].mxu0 %v1376
        %v1657 = vpop.f32.mrb[0].mxu0
        %v1658 = vadd.f32 0.0, %v1657
        %v1659 = vpop.f32.mrb[0].mxu0
        %v1660 = vadd.f32 0.0, %v1659
        %1661 = vdwg.mxu0
        %v1662 = vmax.f32 %v1445, 0.0
        %v1663 = vmax.f32 %v1447, 0.0
        %v1664 = vmax.f32 %v1516, 0.0
        %v1665 = vmax.f32 %v1518, 0.0
        %v1666 = vmax.f32 %v1587, 0.0
        %v1667 = vmax.f32 %v1589, 0.0
        %v1668 = vmax.f32 %v1658, 0.0
        %v1669 = vmax.f32 %v1660, 0.0
        %1670 = vst [vmem:[%s213] sm:$0xff] %v1662
        %1671 = vst [vmem:[%s213 + $0x8] sm:$0xff] %v1663
        %1672 = vst [vmem:[%s213 + $0x10] sm:$0xff] %v1664
        %1673 = vst [vmem:[%s213 + $0x18] sm:$0xff] %v1665
        %1674 = vst [vmem:[%s213 + $0x20] sm:$0xff] %v1666
        %1675 = vst [vmem:[%s213 + $0x28] sm:$0xff] %v1667
        %1676 = vst [vmem:[%s213 + $0x30] sm:$0xff] %v1668
        %1677 = vst [vmem:[%s213 + $0x38] sm:$0xff] %v1669
        %s1678 = sand.u32 %s97, 1
        %s1679 = scalar_lea.sflag [#allocation5], %s1678
        %s1680 = sand.u32 %s97, 1
        %s1681 = smul.addr %s1680, 64
        %s1682 = scalar_lea.vmem [#allocation9], %s1681
        // Predicated region
        $region45: #{tpu_custom_call.1} parent=31 // pred_check
          %p1683 = pneg %p107
        $region46: #{tpu_custom_call.1} parent=31 // pred_check_branch
          %1685 = sbr.rel (%p1683) target = $region48
        $region47: #{tpu_custom_call.1} parent=31 // pred_region
          %s1687 = ssub.s32 1024, 1024
          %1688 = vsyncadd %s1679, %s1687
          %s1689 = smul.addr %s21, 8
          %s1690 = smul.addr %s1689, 128
          %s1691 = scalar_lea.hbm %s3, %s1690
          %s1693 = sshll.u32 %s1682, 4
          %s1694 = int_to_ptr.vmem [resolvable:$true] %s1693
          %1696 = dma.vmem_to_hbm [thread:$0]  %s1694, 1024, %s1691, %s1679
        $region48: #{tpu_custom_call.1} parent=31 // pred_fallthru
          _
      $region32: #{tpu_custom_call.1} parent=5 // pred_fallthru
        _
      %p1697 = scmp.le.s32.totalorder 2, %s16
      // Predicated region
      $region49: #{tpu_custom_call.1} parent=5 // pred_check
        %p1698 = pneg %p1697
      $region50: #{tpu_custom_call.1} parent=5 // pred_check_branch
        %1700 = sbr.rel (%p1698) target = $region52
      $region51: #{tpu_custom_call.1} parent=5 // pred_region
        %s1701 = ssub.s32 %s16, 2
        // Predicated region
        $region53: #{tpu_custom_call.1} parent=51 // pred_check
          %p1702 = pneg %p113
        $region54: #{tpu_custom_call.1} parent=51 // pred_check_branch
          %1704 = sbr.rel (%p1702) target = $region56
        $region55: #{tpu_custom_call.1} parent=51 // pred_region
          %s1705 = sand.u32 %s98, 1
          %s1706 = scalar_lea.sflag [#allocation5], %s1705
          %s1707 = sand.u32 %s98, 1
          %s1708 = smul.addr %s1707, 64
          %s1709 = scalar_lea.vmem [#allocation9], %s1708
          %1710 = dma.done %s1706, 1024
        $region56: #{tpu_custom_call.1} parent=51 // pred_fallthru
          _
      $region52: #{tpu_custom_call.1} parent=5 // pred_fallthru
        _
    $region6: #{tpu_custom_call.1} parent=1 // loop_footer
      %s20 = sadd.s32 1, %s16
    $region7: #{tpu_custom_call.1} parent=1 // loop_footer_branch
      %15 = sbr.rel target = $region3
    $region8: #{tpu_custom_call.1} parent=1 // loop_exit
      _
    %1711 = vsyncpa [#allocation4], 1
    %s1712 = scalar_lea.sflag [#allocation4], 1
    %1713 = vsyncpa %s1712, 1
    %1714 = vsyncpa [#allocation7], 1
    %1715 = vsyncpa [#allocation5], 1
    %s1716 = scalar_lea.sflag [#allocation5], 1
    %1717 = vsyncpa %s1716, 1

</llo_original>
